<compile_context>
chip_gen: v7x
topology: tpu7x:2x2x1
jax: 0.10.0
libtpu: 0.0.40
codegen_flags: <defaults>
</compile_context>

<pallas_src>
import functools

import jax
import jax.numpy as jnp
from jax import lax
from jax.experimental import pallas as pl
from jax.experimental.pallas import tpu as pltpu

# ----- config (small, consistent with the module's __init__) -----
HIDDEN = 32
NUM_GC_LAYERS = 2
EMB = HIDDEN * NUM_GC_LAYERS        # embedding_dim = hidden_dim * num_gc_layers
CLUSTER_EMB = 16                    # cluster_layer is (CLUSTER_EMB, CLUSTER_EMB)
ALPHA = 1.0                         # GPC.__init__ overwrites self.alpha = 1.0

N_NODES = 16
N_GRAPHS = 2
FEAT = 8

# Lane-dense output packing (128-lane vreg width).
LANES = 128
G_Z_OFF = 0
G_Q_OFF = CLUSTER_EMB
G_GENC_OFF = 2 * CLUSTER_EMB
G_USED = 2 * CLUSTER_EMB + EMB      # 96 used lanes in the graph slab

MXU_DTYPE = jnp.bfloat16            # MXU-native on v5e/v6e/v7x


def _vmem_spec():
    return pl.BlockSpec(memory_space=pltpu.MemorySpace.VMEM)


def _mxu(a, b):
    """bf16-in / f32-accumulate matmul (cast is a no-op for already-bf16 weights)."""
    return jnp.dot(a.astype(MXU_DTYPE), b.astype(MXU_DTYPE),
                   preferred_element_type=jnp.float32)


# ---------------------------------------------------------------------------
# InfoGraph-style FF head:  3x(Linear+ReLU) block + linear shortcut.
# (weights bf16, biases / elementwise f32)
# ---------------------------------------------------------------------------
def _ff(x, wb_ref, bb_ref, ws_ref, bs_ref):
    h = x
    for i in range(3):
        h = jnp.maximum(_mxu(h, wb_ref[i]) + bb_ref[i], 0.0)
    return h + _mxu(x, ws_ref[...]) + bs_ref[...]


# ---------------------------------------------------------------------------
# Fused GPC kernel.
#   h_0 = relu((A_hat @ x) @ W0 + b0);  h_l = relu((A_hat @ h_{l-1}) @ W_l + b_l)
#   M   = [h_0 | h_1 | ...]   (kept in vregs, no VMEM scratch round-trip)
#   y   = P @ M               (global sum pool per graph)
#   g_enc = FF_global(y),  l_enc = FF_local(M),  z = Cluster(y)
#   q = 1 / (1 + ||z_i - mu_j||^2);  row-normalize      (alpha == 1.0 baked in)
# Outputs are lane-dense 128-wide slabs, each written with one full-row store.
# ---------------------------------------------------------------------------
def gpc_kernel(x_ref, a_ref, p_ref,
               w0_ref, b0_ref, wl_ref, bl_ref,
               gwb_ref, gbb_ref, gws_ref, gbs_ref,
               lwb_ref, lbb_ref, lws_ref, lbs_ref,
               wc_ref, bc_ref, clayer_ref, csq_ref,
               graph_ref, node_ref):
    a = a_ref[...]                                # bf16 (0/1 values, exact)

    # ---- encoder: per-layer outputs stay in vregs; M formed by one concat
    ax = jnp.dot(a, x_ref[...].astype(MXU_DTYPE),
                 preferred_element_type=jnp.float32)
    h = jnp.maximum(_mxu(ax, w0_ref[...]) + b0_ref[...], 0.0)
    layer_outs = [h]
    for l in range(NUM_GC_LAYERS - 1):
        ah = jnp.dot(a, h.astype(MXU_DTYPE), preferred_element_type=jnp.float32)
        h = jnp.maximum(_mxu(ah, wl_ref[l]) + bl_ref[l], 0.0)
        layer_outs.append(h)
    m = jnp.concatenate(layer_outs, axis=-1)                          # (N, EMB)
    y = jnp.dot(p_ref[...], m.astype(MXU_DTYPE),
                preferred_element_type=jnp.float32)                   # (G, EMB)

    # ---- FF heads + cluster embedding (all stay in VMEM / vregs)
    g_enc = _ff(y, gwb_ref, gbb_ref, gws_ref, gbs_ref)                # (G, EMB)
    l_enc = _ff(m, lwb_ref, lbb_ref, lws_ref, lbs_ref)                # (N, EMB)
    z = _mxu(y, wc_ref[...]) + bc_ref[...]                            # (G, C) f32

    # ---- Student-t soft assignment, matmul-form squared distance.
    # Kept fully f32 (catastrophic-cancellation guard); ||c||^2 precomputed in
    # the wrapper and passed in as csq_ref.
    c = clayer_ref[...]                                               # (C, C) f32
    cross = lax.dot_general(z, c, (((1,), (1,)), ((), ())),
                            preferred_element_type=jnp.float32)       # (G, C)
    z_sq = jnp.sum(z * z, axis=1, keepdims=True)                      # (G, 1)
    dist = jnp.maximum(z_sq + csq_ref[...] - 2.0 * cross, 0.0)

    if ALPHA != 1.0:                      # trace-time specialization: ALPHA == 1.0
        dist = dist / ALPHA
    q = pl.reciprocal(1.0 + dist, approx=True)      # EUP slot; renormalized below
    if (ALPHA + 1.0) / 2.0 != 1.0:        # identity power removed for ALPHA == 1.0
        q = q ** ((ALPHA + 1.0) / 2.0)
    # exact reciprocal for the normalization so rows sum to 1 at f32 precision
    q = q * pl.reciprocal(jnp.sum(q, axis=1, keepdims=True))

    # ---- lane-dense packed outputs: ONE full-width unmasked store per ref
    g_rows = graph_ref.shape[0]
    n_rows = node_ref.shape[0]
    graph_ref[...] = jnp.concatenate(
        [z, q, g_enc, jnp.zeros((g_rows, LANES - G_USED), jnp.float32)], axis=-1)
    node_ref[...] = jnp.concatenate(
        [l_enc, jnp.zeros((n_rows, LANES - EMB), jnp.float32)], axis=-1)


def _gpc_pallas(x, a_hat, pool, params, mxu_w, c_sq):
    n = x.shape[0]
    g = pool.shape[0]
    inputs = (x, a_hat, pool,
              mxu_w["enc_w0"], params["enc_b0"],
              mxu_w["enc_wl"], params["enc_bl"],
              mxu_w["g_wb"], params["g_bb"], mxu_w["g_ws"], params["g_bs"],
              mxu_w["l_wb"], params["l_bb"], mxu_w["l_ws"], params["l_bs"],
              mxu_w["wc"], params["bc"], params["cluster_layer"], c_sq)
    graph_slab, node_slab = pl.pallas_call(
        gpc_kernel,
        out_shape=(jax.ShapeDtypeStruct((g, LANES), jnp.float32),
                   jax.ShapeDtypeStruct((n, LANES), jnp.float32)),
        in_specs=[_vmem_spec() for _ in inputs],
        out_specs=(_vmem_spec(), _vmem_spec()),
    )(*inputs)
    z = graph_slab[:, G_Z_OFF:G_Z_OFF + CLUSTER_EMB]
    q = graph_slab[:, G_Q_OFF:G_Q_OFF + CLUSTER_EMB]
    g_enc = graph_slab[:, G_GENC_OFF:G_GENC_OFF + EMB]
    l_enc = node_slab[:, :EMB]
    return z, q, g_enc, l_enc


# ---------------------------------------------------------------------------
# GPC.forward: returns (z, q, g_enc, l_enc).  Jitted so the adjacency scatter,
# the pooling compare, the bf16 weight casts and the c_sq precompute all fuse
# with (or constant-fold around) the Pallas call.
# ---------------------------------------------------------------------------
@functools.partial(jax.jit, static_argnames=("num_graphs",))
def gpc_forward(x, edge_index, batch, num_graphs, params):
    n = x.shape[0]
    # Dense adjacency with self loops (glue, plain JAX).  0/1 valued -> exact
    # in bf16, halving the largest operand's DMA into the kernel.
    # TODO(synk): for large graphs pass edge_index/batch via scalar prefetch and
    #             do segment aggregation in-kernel instead of dense N x N A_hat.
    a = jnp.zeros((n, n), jnp.float32).at[edge_index[0], edge_index[1]].set(1.0)
    a_hat = (a + jnp.eye(n, dtype=jnp.float32)).astype(MXU_DTYPE)
    # Global sum-pool matrix P: (num_graphs, n), also 0/1 -> exact bf16.
    pool = (batch[None, :] == jnp.arange(num_graphs)[:, None]).astype(MXU_DTYPE)
    # ||cluster_center_j||^2 depends only on params -> precompute outside kernel.
    c = params["cluster_layer"]
    c_sq = jnp.sum(c * c, axis=1)[None, :]                     # (1, CLUSTER_EMB)
    # MXU weight operands as bf16 (biases / cluster_layer stay f32).
    bf = lambda w: w.astype(MXU_DTYPE)
    mxu_w = {
        "enc_w0": bf(params["enc_w0"]), "enc_wl": bf(params["enc_wl"]),
        "g_wb": bf(params["g_wb"]), "g_ws": bf(params["g_ws"]),
        "l_wb": bf(params["l_wb"]), "l_ws": bf(params["l_ws"]),
        "wc": bf(params["wc"]),
    }
    return _gpc_pallas(x, a_hat, pool, params, mxu_w, c_sq)


# ---------------------------------------------------------------------------
# Deterministic parameter init (xavier-uniform style).
# ---------------------------------------------------------------------------
def _xavier(key, shape):
    fan_in, fan_out = shape[-2], shape[-1]
    limit = (6.0 / (fan_in + fan_out)) ** 0.5
    return jax.random.uniform(key, shape, jnp.float32, -limit, limit)


def init_params(key):
    keys = jax.random.split(key, 12)
    p = {}
    # Encoder
    p["enc_w0"] = _xavier(keys[0], (FEAT, HIDDEN))
    p["enc_b0"] = jnp.zeros((1, HIDDEN), jnp.float32)
    p["enc_wl"] = _xavier(keys[1], (max(NUM_GC_LAYERS - 1, 1), HIDDEN, HIDDEN))
    p["enc_bl"] = jnp.zeros((max(NUM_GC_LAYERS - 1, 1), 1, HIDDEN), jnp.float32)
    # global_d FF
    p["g_wb"] = _xavier(keys[2], (3, EMB, EMB))
    p["g_bb"] = jnp.zeros((3, 1, EMB), jnp.float32)
    p["g_ws"] = _xavier(keys[3], (EMB, EMB))
    p["g_bs"] = jnp.zeros((1, EMB), jnp.float32)
    # local_d FF
    p["l_wb"] = _xavier(keys[4], (3, EMB, EMB))
    p["l_bb"] = jnp.zeros((3, 1, EMB), jnp.float32)
    p["l_ws"] = _xavier(keys[5], (EMB, EMB))
    p["l_bs"] = jnp.zeros((1, EMB), jnp.float32)
    # Cluster embedding + cluster_layer parameter
    p["wc"] = _xavier(keys[6], (EMB, CLUSTER_EMB))
    p["bc"] = jnp.zeros((1, CLUSTER_EMB), jnp.float32)
    p["cluster_layer"] = _xavier(keys[7], (CLUSTER_EMB, CLUSTER_EMB))
    return p


if __name__ == "__main__":
    key = jax.random.PRNGKey(0)
    k_param, k_x = jax.random.split(key)
    params = init_params(k_param)

    # Two graphs of 8 nodes each, ring topology (both directions).
    x = jax.random.normal(k_x, (N_NODES, FEAT), jnp.float32)
    batch = jnp.repeat(jnp.arange(N_GRAPHS), N_NODES // N_GRAPHS)

    per = N_NODES // N_GRAPHS
    src, dst = [], []
    for g in range(N_GRAPHS):
        for i in range(per):
            a_node = g * per + i
            b_node = g * per + (i + 1) % per
            src += [a_node, b_node]
            dst += [b_node, a_node]
    edge_index = jnp.array([src, dst], dtype=jnp.int32)   # (2, 32)

    z, q, g_enc, l_enc = gpc_forward(x, edge_index, batch, N_GRAPHS, params)
    jax.block_until_ready((z, q, g_enc, l_enc))

    assert z.shape == (N_GRAPHS, CLUSTER_EMB)
    assert q.shape == (N_GRAPHS, CLUSTER_EMB)
    assert g_enc.shape == (N_GRAPHS, EMB)
    assert l_enc.shape == (N_NODES, EMB)
    # q rows are a probability-like normalization (rows sum to 1).
    assert jnp.allclose(jnp.sum(q, axis=1), 1.0, atol=1e-5)
    assert bool(jnp.all(jnp.isfinite(q)))

    print("KERNEL_OK")
</pallas_src>

<mosaic_0001>
module attributes {stable_mosaic.version = 11 : i64} {
  func.func @gpc_kernel(%arg0: memref<16x8xf32, #tpu.memory_space<vmem>>, %arg1: memref<16x16xbf16, #tpu.memory_space<vmem>>, %arg2: memref<2x16xbf16, #tpu.memory_space<vmem>>, %arg3: memref<8x32xbf16, #tpu.memory_space<vmem>>, %arg4: memref<1x32xf32, #tpu.memory_space<vmem>>, %arg5: memref<1x32x32xbf16, #tpu.memory_space<vmem>>, %arg6: memref<1x1x32xf32, #tpu.memory_space<vmem>>, %arg7: memref<3x64x64xbf16, #tpu.memory_space<vmem>>, %arg8: memref<3x1x64xf32, #tpu.memory_space<vmem>>, %arg9: memref<64x64xbf16, #tpu.memory_space<vmem>>, %arg10: memref<1x64xf32, #tpu.memory_space<vmem>>, %arg11: memref<3x64x64xbf16, #tpu.memory_space<vmem>>, %arg12: memref<3x1x64xf32, #tpu.memory_space<vmem>>, %arg13: memref<64x64xbf16, #tpu.memory_space<vmem>>, %arg14: memref<1x64xf32, #tpu.memory_space<vmem>>, %arg15: memref<64x16xbf16, #tpu.memory_space<vmem>>, %arg16: memref<1x16xf32, #tpu.memory_space<vmem>>, %arg17: memref<16x16xf32, #tpu.memory_space<vmem>>, %arg18: memref<1x16xf32, #tpu.memory_space<vmem>>, %arg19: memref<2x128xf32, #tpu.memory_space<vmem>>, %arg20: memref<16x128xf32, #tpu.memory_space<vmem>>) attributes {dimension_semantics = [], scalar_prefetch = 0 : i64, scratch_operands = 0 : i64, tpu.core_type = #tpu.core_type<tc>} {
    %c0 = arith.constant 0 : index
    %c0_0 = arith.constant 0 : index
    %0 = vector.load %arg1[%c0, %c0_0] : memref<16x16xbf16, #tpu.memory_space<vmem>>, vector<16x16xbf16>
    %c0_1 = arith.constant 0 : index
    %c0_2 = arith.constant 0 : index
    %1 = vector.load %arg0[%c0_1, %c0_2] : memref<16x8xf32, #tpu.memory_space<vmem>>, vector<16x8xf32>
    %2 = arith.truncf %1 : vector<16x8xf32> to vector<16x8xbf16>
    %cst = arith.constant dense<0.000000e+00> : vector<16x8xf32>
    %3 = tpu.matmul %0, %2, %cst {dimension_numbers = #tpu.dot_dimension_numbers<[1], [0], [0], [1], [0, 0, 1, 1], [], []>} : vector<16x16xbf16>, vector<16x8xbf16>, vector<16x8xf32> -> vector<16x8xf32>
    %c0_3 = arith.constant 0 : index
    %c0_4 = arith.constant 0 : index
    %4 = vector.load %arg3[%c0_3, %c0_4] : memref<8x32xbf16, #tpu.memory_space<vmem>>, vector<8x32xbf16>
    %5 = arith.truncf %3 : vector<16x8xf32> to vector<16x8xbf16>
    %cst_5 = arith.constant dense<0.000000e+00> : vector<16x32xf32>
    %6 = tpu.matmul %5, %4, %cst_5 {dimension_numbers = #tpu.dot_dimension_numbers<[1], [0], [0], [1], [0, 0, 1, 1], [], []>} : vector<16x8xbf16>, vector<8x32xbf16>, vector<16x32xf32> -> vector<16x32xf32>
    %c0_6 = arith.constant 0 : index
    %c0_7 = arith.constant 0 : index
    %7 = vector.load %arg4[%c0_6, %c0_7] : memref<1x32xf32, #tpu.memory_space<vmem>>, vector<1x32xf32>
    %8 = vector.broadcast %7 : vector<1x32xf32> to vector<16x32xf32>
    %9 = arith.addf %6, %8 : vector<16x32xf32>
    %cst_8 = arith.constant 0.000000e+00 : f32
    %10 = vector.broadcast %cst_8 : f32 to vector<16x32xf32>
    %11 = arith.maximumf %9, %10 : vector<16x32xf32>
    %12 = arith.truncf %11 : vector<16x32xf32> to vector<16x32xbf16>
    %cst_9 = arith.constant dense<0.000000e+00> : vector<16x32xf32>
    %13 = tpu.matmul %0, %12, %cst_9 {dimension_numbers = #tpu.dot_dimension_numbers<[1], [0], [0], [1], [0, 0, 1, 1], [], []>} : vector<16x16xbf16>, vector<16x32xbf16>, vector<16x32xf32> -> vector<16x32xf32>
    %c0_10 = arith.constant 0 : index
    %c0_11 = arith.constant 0 : index
    %c0_12 = arith.constant 0 : index
    %14 = vector.load %arg5[%c0_10, %c0_11, %c0_12] : memref<1x32x32xbf16, #tpu.memory_space<vmem>>, vector<1x32x32xbf16>
    %15 = vector.shape_cast %14 : vector<1x32x32xbf16> to vector<32x32xbf16>
    %16 = arith.truncf %13 : vector<16x32xf32> to vector<16x32xbf16>
    %cst_13 = arith.constant dense<0.000000e+00> : vector<16x32xf32>
    %17 = tpu.matmul %16, %15, %cst_13 {dimension_numbers = #tpu.dot_dimension_numbers<[1], [0], [0], [1], [0, 0, 1, 1], [], []>} : vector<16x32xbf16>, vector<32x32xbf16>, vector<16x32xf32> -> vector<16x32xf32>
    %c0_14 = arith.constant 0 : index
    %c0_15 = arith.constant 0 : index
    %c0_16 = arith.constant 0 : index
    %18 = vector.load %arg6[%c0_14, %c0_15, %c0_16] : memref<1x1x32xf32, #tpu.memory_space<vmem>>, vector<1x1x32xf32>
    %19 = vector.shape_cast %18 : vector<1x1x32xf32> to vector<1x32xf32>
    %20 = vector.broadcast %19 : vector<1x32xf32> to vector<16x32xf32>
    %21 = arith.addf %17, %20 : vector<16x32xf32>
    %cst_17 = arith.constant 0.000000e+00 : f32
    %22 = vector.broadcast %cst_17 : f32 to vector<16x32xf32>
    %23 = arith.maximumf %21, %22 : vector<16x32xf32>
    %24 = tpu.concatenate %11, %23 in 1 : vector<16x32xf32>, vector<16x32xf32> -> vector<16x64xf32>
    %c0_18 = arith.constant 0 : index
    %c0_19 = arith.constant 0 : index
    %25 = vector.load %arg2[%c0_18, %c0_19] : memref<2x16xbf16, #tpu.memory_space<vmem>>, vector<2x16xbf16>
    %26 = arith.truncf %24 : vector<16x64xf32> to vector<16x64xbf16>
    %cst_20 = arith.constant dense<0.000000e+00> : vector<2x64xf32>
    %27 = tpu.matmul %25, %26, %cst_20 {dimension_numbers = #tpu.dot_dimension_numbers<[1], [0], [0], [1], [0, 0, 1, 1], [], []>} : vector<2x16xbf16>, vector<16x64xbf16>, vector<2x64xf32> -> vector<2x64xf32>
    %c0_21 = arith.constant 0 : index
    %c0_22 = arith.constant 0 : index
    %c0_23 = arith.constant 0 : index
    %28 = vector.load %arg7[%c0_21, %c0_22, %c0_23] : memref<3x64x64xbf16, #tpu.memory_space<vmem>>, vector<1x64x64xbf16>
    %29 = vector.shape_cast %28 : vector<1x64x64xbf16> to vector<64x64xbf16>
    %30 = arith.truncf %27 : vector<2x64xf32> to vector<2x64xbf16>
    %cst_24 = arith.constant dense<0.000000e+00> : vector<2x64xf32>
    %31 = tpu.matmul %30, %29, %cst_24 {dimension_numbers = #tpu.dot_dimension_numbers<[1], [0], [0], [1], [0, 0, 1, 1], [], []>} : vector<2x64xbf16>, vector<64x64xbf16>, vector<2x64xf32> -> vector<2x64xf32>
    %c0_25 = arith.constant 0 : index
    %c0_26 = arith.constant 0 : index
    %c0_27 = arith.constant 0 : index
    %32 = vector.load %arg8[%c0_25, %c0_26, %c0_27] : memref<3x1x64xf32, #tpu.memory_space<vmem>>, vector<1x1x64xf32>
    %33 = vector.shape_cast %32 : vector<1x1x64xf32> to vector<1x64xf32>
    %34 = vector.broadcast %33 : vector<1x64xf32> to vector<2x64xf32>
    %35 = arith.addf %31, %34 : vector<2x64xf32>
    %cst_28 = arith.constant 0.000000e+00 : f32
    %36 = vector.broadcast %cst_28 : f32 to vector<2x64xf32>
    %37 = arith.maximumf %35, %36 : vector<2x64xf32>
    %c1 = arith.constant 1 : index
    %c0_29 = arith.constant 0 : index
    %c0_30 = arith.constant 0 : index
    %38 = vector.load %arg7[%c1, %c0_29, %c0_30] : memref<3x64x64xbf16, #tpu.memory_space<vmem>>, vector<1x64x64xbf16>
    %39 = vector.shape_cast %38 : vector<1x64x64xbf16> to vector<64x64xbf16>
    %40 = arith.truncf %37 : vector<2x64xf32> to vector<2x64xbf16>
    %cst_31 = arith.constant dense<0.000000e+00> : vector<2x64xf32>
    %41 = tpu.matmul %40, %39, %cst_31 {dimension_numbers = #tpu.dot_dimension_numbers<[1], [0], [0], [1], [0, 0, 1, 1], [], []>} : vector<2x64xbf16>, vector<64x64xbf16>, vector<2x64xf32> -> vector<2x64xf32>
    %c1_32 = arith.constant 1 : index
    %c0_33 = arith.constant 0 : index
    %c0_34 = arith.constant 0 : index
    %42 = vector.load %arg8[%c1_32, %c0_33, %c0_34] : memref<3x1x64xf32, #tpu.memory_space<vmem>>, vector<1x1x64xf32>
    %43 = vector.shape_cast %42 : vector<1x1x64xf32> to vector<1x64xf32>
    %44 = vector.broadcast %43 : vector<1x64xf32> to vector<2x64xf32>
    %45 = arith.addf %41, %44 : vector<2x64xf32>
    %cst_35 = arith.constant 0.000000e+00 : f32
    %46 = vector.broadcast %cst_35 : f32 to vector<2x64xf32>
    %47 = arith.maximumf %45, %46 : vector<2x64xf32>
    %c2 = arith.constant 2 : index
    %c0_36 = arith.constant 0 : index
    %c0_37 = arith.constant 0 : index
    %48 = vector.load %arg7[%c2, %c0_36, %c0_37] : memref<3x64x64xbf16, #tpu.memory_space<vmem>>, vector<1x64x64xbf16>
    %49 = vector.shape_cast %48 : vector<1x64x64xbf16> to vector<64x64xbf16>
    %50 = arith.truncf %47 : vector<2x64xf32> to vector<2x64xbf16>
    %cst_38 = arith.constant dense<0.000000e+00> : vector<2x64xf32>
    %51 = tpu.matmul %50, %49, %cst_38 {dimension_numbers = #tpu.dot_dimension_numbers<[1], [0], [0], [1], [0, 0, 1, 1], [], []>} : vector<2x64xbf16>, vector<64x64xbf16>, vector<2x64xf32> -> vector<2x64xf32>
    %c2_39 = arith.constant 2 : index
    %c0_40 = arith.constant 0 : index
    %c0_41 = arith.constant 0 : index
    %52 = vector.load %arg8[%c2_39, %c0_40, %c0_41] : memref<3x1x64xf32, #tpu.memory_space<vmem>>, vector<1x1x64xf32>
    %53 = vector.shape_cast %52 : vector<1x1x64xf32> to vector<1x64xf32>
    %54 = vector.broadcast %53 : vector<1x64xf32> to vector<2x64xf32>
    %55 = arith.addf %51, %54 : vector<2x64xf32>
    %cst_42 = arith.constant 0.000000e+00 : f32
    %56 = vector.broadcast %cst_42 : f32 to vector<2x64xf32>
    %57 = arith.maximumf %55, %56 : vector<2x64xf32>
    %c0_43 = arith.constant 0 : index
    %c0_44 = arith.constant 0 : index
    %58 = vector.load %arg9[%c0_43, %c0_44] : memref<64x64xbf16, #tpu.memory_space<vmem>>, vector<64x64xbf16>
    %59 = arith.truncf %27 : vector<2x64xf32> to vector<2x64xbf16>
    %cst_45 = arith.constant dense<0.000000e+00> : vector<2x64xf32>
    %60 = tpu.matmul %59, %58, %cst_45 {dimension_numbers = #tpu.dot_dimension_numbers<[1], [0], [0], [1], [0, 0, 1, 1], [], []>} : vector<2x64xbf16>, vector<64x64xbf16>, vector<2x64xf32> -> vector<2x64xf32>
    %61 = arith.addf %57, %60 : vector<2x64xf32>
    %c0_46 = arith.constant 0 : index
    %c0_47 = arith.constant 0 : index
    %62 = vector.load %arg10[%c0_46, %c0_47] : memref<1x64xf32, #tpu.memory_space<vmem>>, vector<1x64xf32>
    %63 = vector.broadcast %62 : vector<1x64xf32> to vector<2x64xf32>
    %64 = arith.addf %61, %63 : vector<2x64xf32>
    %c0_48 = arith.constant 0 : index
    %c0_49 = arith.constant 0 : index
    %c0_50 = arith.constant 0 : index
    %65 = vector.load %arg11[%c0_48, %c0_49, %c0_50] : memref<3x64x64xbf16, #tpu.memory_space<vmem>>, vector<1x64x64xbf16>
    %66 = vector.shape_cast %65 : vector<1x64x64xbf16> to vector<64x64xbf16>
    %67 = arith.truncf %24 : vector<16x64xf32> to vector<16x64xbf16>
    %cst_51 = arith.constant dense<0.000000e+00> : vector<16x64xf32>
    %68 = tpu.matmul %67, %66, %cst_51 {dimension_numbers = #tpu.dot_dimension_numbers<[1], [0], [0], [1], [0, 0, 1, 1], [], []>} : vector<16x64xbf16>, vector<64x64xbf16>, vector<16x64xf32> -> vector<16x64xf32>
    %c0_52 = arith.constant 0 : index
    %c0_53 = arith.constant 0 : index
    %c0_54 = arith.constant 0 : index
    %69 = vector.load %arg12[%c0_52, %c0_53, %c0_54] : memref<3x1x64xf32, #tpu.memory_space<vmem>>, vector<1x1x64xf32>
    %70 = vector.shape_cast %69 : vector<1x1x64xf32> to vector<1x64xf32>
    %71 = vector.broadcast %70 : vector<1x64xf32> to vector<16x64xf32>
    %72 = arith.addf %68, %71 : vector<16x64xf32>
    %cst_55 = arith.constant 0.000000e+00 : f32
    %73 = vector.broadcast %cst_55 : f32 to vector<16x64xf32>
    %74 = arith.maximumf %72, %73 : vector<16x64xf32>
    %c1_56 = arith.constant 1 : index
    %c0_57 = arith.constant 0 : index
    %c0_58 = arith.constant 0 : index
    %75 = vector.load %arg11[%c1_56, %c0_57, %c0_58] : memref<3x64x64xbf16, #tpu.memory_space<vmem>>, vector<1x64x64xbf16>
    %76 = vector.shape_cast %75 : vector<1x64x64xbf16> to vector<64x64xbf16>
    %77 = arith.truncf %74 : vector<16x64xf32> to vector<16x64xbf16>
    %cst_59 = arith.constant dense<0.000000e+00> : vector<16x64xf32>
    %78 = tpu.matmul %77, %76, %cst_59 {dimension_numbers = #tpu.dot_dimension_numbers<[1], [0], [0], [1], [0, 0, 1, 1], [], []>} : vector<16x64xbf16>, vector<64x64xbf16>, vector<16x64xf32> -> vector<16x64xf32>
    %c1_60 = arith.constant 1 : index
    %c0_61 = arith.constant 0 : index
    %c0_62 = arith.constant 0 : index
    %79 = vector.load %arg12[%c1_60, %c0_61, %c0_62] : memref<3x1x64xf32, #tpu.memory_space<vmem>>, vector<1x1x64xf32>
    %80 = vector.shape_cast %79 : vector<1x1x64xf32> to vector<1x64xf32>
    %81 = vector.broadcast %80 : vector<1x64xf32> to vector<16x64xf32>
    %82 = arith.addf %78, %81 : vector<16x64xf32>
    %cst_63 = arith.constant 0.000000e+00 : f32
    %83 = vector.broadcast %cst_63 : f32 to vector<16x64xf32>
    %84 = arith.maximumf %82, %83 : vector<16x64xf32>
    %c2_64 = arith.constant 2 : index
    %c0_65 = arith.constant 0 : index
    %c0_66 = arith.constant 0 : index
    %85 = vector.load %arg11[%c2_64, %c0_65, %c0_66] : memref<3x64x64xbf16, #tpu.memory_space<vmem>>, vector<1x64x64xbf16>
    %86 = vector.shape_cast %85 : vector<1x64x64xbf16> to vector<64x64xbf16>
    %87 = arith.truncf %84 : vector<16x64xf32> to vector<16x64xbf16>
    %cst_67 = arith.constant dense<0.000000e+00> : vector<16x64xf32>
    %88 = tpu.matmul %87, %86, %cst_67 {dimension_numbers = #tpu.dot_dimension_numbers<[1], [0], [0], [1], [0, 0, 1, 1], [], []>} : vector<16x64xbf16>, vector<64x64xbf16>, vector<16x64xf32> -> vector<16x64xf32>
    %c2_68 = arith.constant 2 : index
    %c0_69 = arith.constant 0 : index
    %c0_70 = arith.constant 0 : index
    %89 = vector.load %arg12[%c2_68, %c0_69, %c0_70] : memref<3x1x64xf32, #tpu.memory_space<vmem>>, vector<1x1x64xf32>
    %90 = vector.shape_cast %89 : vector<1x1x64xf32> to vector<1x64xf32>
    %91 = vector.broadcast %90 : vector<1x64xf32> to vector<16x64xf32>
    %92 = arith.addf %88, %91 : vector<16x64xf32>
    %cst_71 = arith.constant 0.000000e+00 : f32
    %93 = vector.broadcast %cst_71 : f32 to vector<16x64xf32>
    %94 = arith.maximumf %92, %93 : vector<16x64xf32>
    %c0_72 = arith.constant 0 : index
    %c0_73 = arith.constant 0 : index
    %95 = vector.load %arg13[%c0_72, %c0_73] : memref<64x64xbf16, #tpu.memory_space<vmem>>, vector<64x64xbf16>
    %96 = arith.truncf %24 : vector<16x64xf32> to vector<16x64xbf16>
    %cst_74 = arith.constant dense<0.000000e+00> : vector<16x64xf32>
    %97 = tpu.matmul %96, %95, %cst_74 {dimension_numbers = #tpu.dot_dimension_numbers<[1], [0], [0], [1], [0, 0, 1, 1], [], []>} : vector<16x64xbf16>, vector<64x64xbf16>, vector<16x64xf32> -> vector<16x64xf32>
    %98 = arith.addf %94, %97 : vector<16x64xf32>
    %c0_75 = arith.constant 0 : index
    %c0_76 = arith.constant 0 : index
    %99 = vector.load %arg14[%c0_75, %c0_76] : memref<1x64xf32, #tpu.memory_space<vmem>>, vector<1x64xf32>
    %100 = vector.broadcast %99 : vector<1x64xf32> to vector<16x64xf32>
    %101 = arith.addf %98, %100 : vector<16x64xf32>
    %c0_77 = arith.constant 0 : index
    %c0_78 = arith.constant 0 : index
    %102 = vector.load %arg15[%c0_77, %c0_78] : memref<64x16xbf16, #tpu.memory_space<vmem>>, vector<64x16xbf16>
    %103 = arith.truncf %27 : vector<2x64xf32> to vector<2x64xbf16>
    %cst_79 = arith.constant dense<0.000000e+00> : vector<2x16xf32>
    %104 = tpu.matmul %103, %102, %cst_79 {dimension_numbers = #tpu.dot_dimension_numbers<[1], [0], [0], [1], [0, 0, 1, 1], [], []>} : vector<2x64xbf16>, vector<64x16xbf16>, vector<2x16xf32> -> vector<2x16xf32>
    %c0_80 = arith.constant 0 : index
    %c0_81 = arith.constant 0 : index
    %105 = vector.load %arg16[%c0_80, %c0_81] : memref<1x16xf32, #tpu.memory_space<vmem>>, vector<1x16xf32>
    %106 = vector.broadcast %105 : vector<1x16xf32> to vector<2x16xf32>
    %107 = arith.addf %104, %106 : vector<2x16xf32>
    %c0_82 = arith.constant 0 : index
    %c0_83 = arith.constant 0 : index
    %108 = vector.load %arg17[%c0_82, %c0_83] : memref<16x16xf32, #tpu.memory_space<vmem>>, vector<16x16xf32>
    %cst_84 = arith.constant dense<0.000000e+00> : vector<2x16xf32>
    %109 = tpu.matmul %107, %108, %cst_84 {dimension_numbers = #tpu.dot_dimension_numbers<[1], [1], [0], [0], [0, 0, 1, 0], [], []>} : vector<2x16xf32>, vector<16x16xf32>, vector<2x16xf32> -> vector<2x16xf32>
    %110 = arith.mulf %107, %107 : vector<2x16xf32>
    %cst_85 = arith.constant dense<0.000000e+00> : vector<2xf32>
    %111 = vector.multi_reduction <add>, %110, %cst_85 [1] : vector<2x16xf32> to vector<2xf32>
    %112 = vector.shape_cast %111 : vector<2xf32> to vector<2x1xf32>
    %c0_86 = arith.constant 0 : index
    %c0_87 = arith.constant 0 : index
    %113 = vector.load %arg18[%c0_86, %c0_87] : memref<1x16xf32, #tpu.memory_space<vmem>>, vector<1x16xf32>
    %114 = vector.broadcast %112 : vector<2x1xf32> to vector<2x16xf32>
    %115 = vector.broadcast %113 : vector<1x16xf32> to vector<2x16xf32>
    %116 = arith.addf %114, %115 : vector<2x16xf32>
    %cst_88 = arith.constant 2.000000e+00 : f32
    %117 = vector.broadcast %cst_88 : f32 to vector<2x16xf32>
    %118 = arith.mulf %117, %109 : vector<2x16xf32>
    %119 = arith.subf %116, %118 : vector<2x16xf32>
    %cst_89 = arith.constant 0.000000e+00 : f32
    %120 = vector.broadcast %cst_89 : f32 to vector<2x16xf32>
    %121 = arith.maximumf %119, %120 : vector<2x16xf32>
    %cst_90 = arith.constant 1.000000e+00 : f32
    %122 = vector.broadcast %cst_90 : f32 to vector<2x16xf32>
    %123 = arith.addf %122, %121 : vector<2x16xf32>
    %124 = tpu.reciprocal %123 {approx = true} : vector<2x16xf32> -> vector<2x16xf32>
    %cst_91 = arith.constant dense<0.000000e+00> : vector<2xf32>
    %125 = vector.multi_reduction <add>, %124, %cst_91 [1] : vector<2x16xf32> to vector<2xf32>
    %126 = vector.shape_cast %125 : vector<2xf32> to vector<2x1xf32>
    %127 = tpu.reciprocal %126 : vector<2x1xf32> -> vector<2x1xf32>
    %128 = vector.broadcast %127 : vector<2x1xf32> to vector<2x16xf32>
    %129 = arith.mulf %124, %128 : vector<2x16xf32>
    %cst_92 = arith.constant 0.000000e+00 : f32
    %130 = vector.broadcast %cst_92 : f32 to vector<2x32xf32>
    %131 = tpu.concatenate %107, %129, %64, %130 in 1 : vector<2x16xf32>, vector<2x16xf32>, vector<2x64xf32>, vector<2x32xf32> -> vector<2x128xf32>
    %c0_93 = arith.constant 0 : index
    %c0_94 = arith.constant 0 : index
    %132 = vector.load %arg19[%c0_93, %c0_94] : memref<2x128xf32, #tpu.memory_space<vmem>>, vector<2x128xf32>
    tpu.vector_store %arg19[%c0_93, %c0_94], %131 {strides = array<i32>} : memref<2x128xf32, #tpu.memory_space<vmem>>, vector<2x128xf32>,
    %cst_95 = arith.constant 0.000000e+00 : f32
    %133 = vector.broadcast %cst_95 : f32 to vector<16x64xf32>
    %134 = tpu.concatenate %101, %133 in 1 : vector<16x64xf32>, vector<16x64xf32> -> vector<16x128xf32>
    %c0_96 = arith.constant 0 : index
    %c0_97 = arith.constant 0 : index
    %135 = vector.load %arg20[%c0_96, %c0_97] : memref<16x128xf32, #tpu.memory_space<vmem>>, vector<16x128xf32>
    tpu.vector_store %arg20[%c0_96, %c0_97], %134 {strides = array<i32>} : memref<16x128xf32, #tpu.memory_space<vmem>>, vector<16x128xf32>,
    return
  }
}

</mosaic_0001>

<llo_original>
// kernel: gpc_forward.1
$region0: #{gpc_forward.1}
  #allocation0 [shape = 'u32[]', space=smem, size = 0x4, offset = 0x4, fixed_abs, tag = 'smem constant byte address 0x4 - core index']
  #allocation1 [shape = 'u32[144,128]{1,0:T(1,128)}', space=vmem, size = 0x12000, scoped, tag = 'internal scratch']
  %s0 = inlined_call_operand.vmem [shape: f32[16,8], index: 0, kind: input, shape index: {}]
  %s1 = inlined_call_operand.vmem [shape: bf16[16,16], index: 1, kind: input, shape index: {}]
  %s2 = inlined_call_operand.vmem [shape: bf16[2,16], index: 2, kind: input, shape index: {}]
  %s3 = inlined_call_operand.vmem [shape: bf16[8,32], index: 3, kind: input, shape index: {}]
  %s4 = inlined_call_operand.vmem [shape: f32[1,32], index: 4, kind: input, shape index: {}]
  %s5 = inlined_call_operand.vmem [shape: bf16[1,32,32], index: 5, kind: input, shape index: {}]
  %s6 = inlined_call_operand.vmem [shape: f32[1,1,32], index: 6, kind: input, shape index: {}]
  %s7 = inlined_call_operand.vmem [shape: bf16[3,64,64], index: 7, kind: input, shape index: {}]
  %s8 = inlined_call_operand.vmem [shape: f32[3,1,64], index: 8, kind: input, shape index: {}]
  %s9 = inlined_call_operand.vmem [shape: bf16[64,64], index: 9, kind: input, shape index: {}]
  %s10 = inlined_call_operand.vmem [shape: f32[1,64], index: 10, kind: input, shape index: {}]
  %s11 = inlined_call_operand.vmem [shape: bf16[3,64,64], index: 11, kind: input, shape index: {}]
  %s12 = inlined_call_operand.vmem [shape: f32[3,1,64], index: 12, kind: input, shape index: {}]
  %s13 = inlined_call_operand.vmem [shape: bf16[64,64], index: 13, kind: input, shape index: {}]
  %s14 = inlined_call_operand.vmem [shape: f32[1,64], index: 14, kind: input, shape index: {}]
  %s15 = inlined_call_operand.vmem [shape: bf16[64,16], index: 15, kind: input, shape index: {}]
  %s16 = inlined_call_operand.vmem [shape: f32[1,16], index: 16, kind: input, shape index: {}]
  %s17 = inlined_call_operand.vmem [shape: f32[16,16], index: 17, kind: input, shape index: {}]
  %s18 = inlined_call_operand.vmem [shape: f32[1,16], index: 18, kind: input, shape index: {}]
  %s19 = inlined_call_operand.vmem [shape: f32[2,128], index: 19, kind: output, shape index: {0}]
  %s20 = inlined_call_operand.hbm [shape: f32[16,128], index: 20, kind: output, shape index: {1}]
  %21 = xla_tuple %s19, %s20
  %s22 = sld [smem:[#allocation0]]
  $region94: #{gpc_forward.1} parent=0
    _
  %s24 = ssub.s32 1, %s22
  %s25 = scalar_select 0, %s24, %s22
  $region1: #{gpc_forward.1} parent=0
    #allocation2 [shape = 'u8[8192]{0}', space=vmem, size = 0x2000, scoped, tag = 'output window, operand 1, single buffered']
    #allocation3 [shape = 's32[1]{0}', space=sflag, size = 0x4, scoped, tag = 'scoped memory for gpc_forward.1']
    %26 = vsyncpa [#allocation3], 0
    // Predicated region
    $region2: #{gpc_forward.1} parent=1 // pred_check
      _
    $region3: #{gpc_forward.1} parent=1 // pred_check_branch
      %28 = sbr.rel (0) target = $region5
    $region4: #{gpc_forward.1} parent=1 // pred_region
      _
    $region5: #{gpc_forward.1} parent=1 // pred_fallthru
      _
    // Predicated region
    $region6: #{gpc_forward.1} parent=1 // pred_check
      _
    $region7: #{gpc_forward.1} parent=1 // pred_check_branch
      %30 = sbr.rel (0) target = $region9
    $region8: #{gpc_forward.1} parent=1 // pred_region
      _
    $region9: #{gpc_forward.1} parent=1 // pred_fallthru
      _
    // Predicated region
    $region10: #{gpc_forward.1} parent=1 // pred_check
      _
    $region11: #{gpc_forward.1} parent=1 // pred_check_branch
      %32 = sbr.rel (0) target = $region13
    $region12: #{gpc_forward.1} parent=1 // pred_region
      _
    $region13: #{gpc_forward.1} parent=1 // pred_fallthru
      _
    // Predicated region
    $region14: #{gpc_forward.1} parent=1 // pred_check
      _
    $region15: #{gpc_forward.1} parent=1 // pred_check_branch
      %34 = sbr.rel (0) target = $region17
    $region16: #{gpc_forward.1} parent=1 // pred_region
      _
    $region17: #{gpc_forward.1} parent=1 // pred_fallthru
      _
    // Predicated region
    $region18: #{gpc_forward.1} parent=1 // pred_check
      _
    $region19: #{gpc_forward.1} parent=1 // pred_check_branch
      %36 = sbr.rel (0) target = $region21
    $region20: #{gpc_forward.1} parent=1 // pred_region
      _
    $region21: #{gpc_forward.1} parent=1 // pred_fallthru
      _
    // Predicated region
    $region22: #{gpc_forward.1} parent=1 // pred_check
      _
    $region23: #{gpc_forward.1} parent=1 // pred_check_branch
      %38 = sbr.rel (0) target = $region25
    $region24: #{gpc_forward.1} parent=1 // pred_region
      _
    $region25: #{gpc_forward.1} parent=1 // pred_fallthru
      _
    // Predicated region
    $region26: #{gpc_forward.1} parent=1 // pred_check
      _
    $region27: #{gpc_forward.1} parent=1 // pred_check_branch
      %40 = sbr.rel (0) target = $region29
    $region28: #{gpc_forward.1} parent=1 // pred_region
      _
    $region29: #{gpc_forward.1} parent=1 // pred_fallthru
      _
    // Predicated region
    $region30: #{gpc_forward.1} parent=1 // pred_check
      _
    $region31: #{gpc_forward.1} parent=1 // pred_check_branch
      %42 = sbr.rel (0) target = $region33
    $region32: #{gpc_forward.1} parent=1 // pred_region
      _
    $region33: #{gpc_forward.1} parent=1 // pred_fallthru
      _
    // Predicated region
    $region34: #{gpc_forward.1} parent=1 // pred_check
      _
    $region35: #{gpc_forward.1} parent=1 // pred_check_branch
      %44 = sbr.rel (0) target = $region37
    $region36: #{gpc_forward.1} parent=1 // pred_region
      _
    $region37: #{gpc_forward.1} parent=1 // pred_fallthru
      _
    // Predicated region
    $region38: #{gpc_forward.1} parent=1 // pred_check
      _
    $region39: #{gpc_forward.1} parent=1 // pred_check_branch
      %46 = sbr.rel (0) target = $region41
    $region40: #{gpc_forward.1} parent=1 // pred_region
      _
    $region41: #{gpc_forward.1} parent=1 // pred_fallthru
      _
    // Predicated region
    $region42: #{gpc_forward.1} parent=1 // pred_check
      _
    $region43: #{gpc_forward.1} parent=1 // pred_check_branch
      %48 = sbr.rel (0) target = $region45
    $region44: #{gpc_forward.1} parent=1 // pred_region
      _
    $region45: #{gpc_forward.1} parent=1 // pred_fallthru
      _
    // Predicated region
    $region46: #{gpc_forward.1} parent=1 // pred_check
      _
    $region47: #{gpc_forward.1} parent=1 // pred_check_branch
      %50 = sbr.rel (0) target = $region49
    $region48: #{gpc_forward.1} parent=1 // pred_region
      _
    $region49: #{gpc_forward.1} parent=1 // pred_fallthru
      _
    // Predicated region
    $region50: #{gpc_forward.1} parent=1 // pred_check
      _
    $region51: #{gpc_forward.1} parent=1 // pred_check_branch
      %52 = sbr.rel (0) target = $region53
    $region52: #{gpc_forward.1} parent=1 // pred_region
      _
    $region53: #{gpc_forward.1} parent=1 // pred_fallthru
      _
    // Predicated region
    $region54: #{gpc_forward.1} parent=1 // pred_check
      _
    $region55: #{gpc_forward.1} parent=1 // pred_check_branch
      %54 = sbr.rel (0) target = $region57
    $region56: #{gpc_forward.1} parent=1 // pred_region
      _
    $region57: #{gpc_forward.1} parent=1 // pred_fallthru
      _
    // Predicated region
    $region58: #{gpc_forward.1} parent=1 // pred_check
      _
    $region59: #{gpc_forward.1} parent=1 // pred_check_branch
      %56 = sbr.rel (0) target = $region61
    $region60: #{gpc_forward.1} parent=1 // pred_region
      _
    $region61: #{gpc_forward.1} parent=1 // pred_fallthru
      _
    // Predicated region
    $region62: #{gpc_forward.1} parent=1 // pred_check
      _
    $region63: #{gpc_forward.1} parent=1 // pred_check_branch
      %58 = sbr.rel (0) target = $region65
    $region64: #{gpc_forward.1} parent=1 // pred_region
      _
    $region65: #{gpc_forward.1} parent=1 // pred_fallthru
      _
    // Predicated region
    $region66: #{gpc_forward.1} parent=1 // pred_check
      _
    $region67: #{gpc_forward.1} parent=1 // pred_check_branch
      %60 = sbr.rel (0) target = $region69
    $region68: #{gpc_forward.1} parent=1 // pred_region
      _
    $region69: #{gpc_forward.1} parent=1 // pred_fallthru
      _
    // Predicated region
    $region70: #{gpc_forward.1} parent=1 // pred_check
      _
    $region71: #{gpc_forward.1} parent=1 // pred_check_branch
      %62 = sbr.rel (0) target = $region73
    $region72: #{gpc_forward.1} parent=1 // pred_region
      _
    $region73: #{gpc_forward.1} parent=1 // pred_fallthru
      _
    // Predicated region
    $region74: #{gpc_forward.1} parent=1 // pred_check
      _
    $region75: #{gpc_forward.1} parent=1 // pred_check_branch
      %64 = sbr.rel (0) target = $region77
    $region76: #{gpc_forward.1} parent=1 // pred_region
      _
    $region77: #{gpc_forward.1} parent=1 // pred_fallthru
      _
    %v66 = vld [vmem:[%s1] sm:$0xf]
    %v67 = vld [vmem:[%s1 + $0x4] sm:$0xf]
    %v68 = vld [vmem:[%s0] sm:$0xff]
    %v69 = vld [vmem:[%s0 + $0x8] sm:$0xff]
    %v70 = vpack.c.bf16 %v69, %v68
    %v73 = vunpack.c.l.b16 %v66
    %v74 = vunpack.c.l.b16 %v67
    %v75 = vpack.c.b16 %v74, %v73
    %vm76 = vcmask 130048
    %v78 = vsel %vm76, %v75, 0
    %80 = vmatprep.subr.bf16.mxu0 0
    %81 = vmatpush1.bf16.msra.mxu0 %v70
    %82 = vmatprep.subr.bf16.mxu0 0
    %83 = vmatpush1.bf16.msra.mxu0 0
    %84 = vmatprep.subr.bf16.mxu0 0
    %85 = vmatpush1.bf16.msra.mxu0 0
    %86 = vmatprep.subr.bf16.mxu0 0
    %87 = vmatpush1.bf16.msra.mxu0 0
    %88 = vmatprep.subr.bf16.mxu0 0
    %89 = vmatpush1.bf16.msra.mxu0 0
    %90 = vmatprep.subr.bf16.mxu0 0
    %91 = vmatpush1.bf16.msra.mxu0 0
    %92 = vmatprep.subr.bf16.mxu0 0
    %93 = vmatpush1.bf16.msra.mxu0 0
    %94 = vmatprep.subr.bf16.mxu0 0
    %95 = vmatpush1.bf16.msra.mxu0 0
    %96 = vmatprep.subr.bf16.mxu0 0
    %97 = vmatpush1.bf16.msra.mxu0 0
    %98 = vmatprep.subr.bf16.mxu0 0
    %99 = vmatpush1.bf16.msra.mxu0 0
    %100 = vmatprep.subr.bf16.mxu0 0
    %101 = vmatpush1.bf16.msra.mxu0 0
    %102 = vmatprep.subr.bf16.mxu0 0
    %103 = vmatpush1.bf16.msra.mxu0 0
    %104 = vmatprep.subr.bf16.mxu0 0
    %105 = vmatpush1.bf16.msra.mxu0 0
    %106 = vmatprep.subr.bf16.mxu0 0
    %107 = vmatpush1.bf16.msra.mxu0 0
    %108 = vmatprep.subr.bf16.mxu0 0
    %109 = vmatpush1.bf16.msra.mxu0 0
    %110 = vmatprep.subr.bf16.mxu0 0
    %111 = vmatpush1.bf16.msra.mxu0 0
    %112 = vmatprep.mubr.bf16.mxu0 0
    %113 = vmatmul.mubr.bf16.gmra.mrb[0].mxu0 %v78
    %v114 = vpop.f32.mrb[0].mxu0
    %v115 = vadd.f32 0.0, %v114
    %v116 = vpop.f32.mrb[0].mxu0
    %v117 = vpop.f32.mrb[0].mxu0
    %v118 = vadd.f32 0.0, %v117
    %v119 = vpop.f32.mrb[0].mxu0
    %120 = vdwg.mxu0
    %v121 = vld [vmem:[%s3] sm:$0xf]
    %v122 = vpack.c.bf16 %v118, %v115
    %v123 = vld [vmem:[%s4] sm:$0x1]
    %v125 = vlaneseq
    %v126 = vshrl.u32 %v125, 7
    %v127 = vsub.s32 0, %v126
    %v128 = vrot.slane %v123, %v127
    %vm130 = vcmask 64512
    %v132 = vsel %vm130, %v122, 0
    %vm134 = vcmask 1043456
    %v136 = vsel %vm134, %v121, 0
    %138 = vmatprep.subr.bf16.mxu0 0
    %139 = vmatpush1.bf16.msra.mxu0 %v136
    %140 = vmatprep.subr.bf16.mxu0 0
    %141 = vmatpush1.bf16.msra.mxu0 0
    %142 = vmatprep.subr.bf16.mxu0 0
    %143 = vmatpush1.bf16.msra.mxu0 0
    %144 = vmatprep.subr.bf16.mxu0 0
    %145 = vmatpush1.bf16.msra.mxu0 0
    %146 = vmatprep.subr.bf16.mxu0 0
    %147 = vmatpush1.bf16.msra.mxu0 0
    %148 = vmatprep.subr.bf16.mxu0 0
    %149 = vmatpush1.bf16.msra.mxu0 0
    %150 = vmatprep.subr.bf16.mxu0 0
    %151 = vmatpush1.bf16.msra.mxu0 0
    %152 = vmatprep.subr.bf16.mxu0 0
    %153 = vmatpush1.bf16.msra.mxu0 0
    %154 = vmatprep.subr.bf16.mxu0 0
    %155 = vmatpush1.bf16.msra.mxu0 0
    %156 = vmatprep.subr.bf16.mxu0 0
    %157 = vmatpush1.bf16.msra.mxu0 0
    %158 = vmatprep.subr.bf16.mxu0 0
    %159 = vmatpush1.bf16.msra.mxu0 0
    %160 = vmatprep.subr.bf16.mxu0 0
    %161 = vmatpush1.bf16.msra.mxu0 0
    %162 = vmatprep.subr.bf16.mxu0 0
    %163 = vmatpush1.bf16.msra.mxu0 0
    %164 = vmatprep.subr.bf16.mxu0 0
    %165 = vmatpush1.bf16.msra.mxu0 0
    %166 = vmatprep.subr.bf16.mxu0 0
    %167 = vmatpush1.bf16.msra.mxu0 0
    %168 = vmatprep.subr.bf16.mxu0 0
    %169 = vmatpush1.bf16.msra.mxu0 0
    %170 = vmatprep.mubr.bf16.mxu0 0
    %171 = vmatmul.mubr.bf16.gmra.mrb[0].mxu0 %v132
    %v172 = vpop.f32.mrb[0].mxu0
    %v173 = vadd.f32 %v128, %v172
    %v174 = vpop.f32.mrb[0].mxu0
    %v175 = vpop.f32.mrb[0].mxu0
    %v176 = vadd.f32 %v128, %v175
    %v177 = vpop.f32.mrb[0].mxu0
    %178 = vdwg.mxu0
    %v179 = vmax.f32 %v173, 0.0
    %v180 = vmax.f32 %v176, 0.0
    %v181 = vpack.c.bf16 %v180, %v179
    %182 = vmatprep.subr.bf16.mxu0 0
    %183 = vmatpush1.bf16.msra.mxu0 %v181
    %184 = vmatprep.subr.bf16.mxu0 0
    %185 = vmatpush1.bf16.msra.mxu0 0
    %186 = vmatprep.subr.bf16.mxu0 0
    %187 = vmatpush1.bf16.msra.mxu0 0
    %188 = vmatprep.subr.bf16.mxu0 0
    %189 = vmatpush1.bf16.msra.mxu0 0
    %190 = vmatprep.subr.bf16.mxu0 0
    %191 = vmatpush1.bf16.msra.mxu0 0
    %192 = vmatprep.subr.bf16.mxu0 0
    %193 = vmatpush1.bf16.msra.mxu0 0
    %194 = vmatprep.subr.bf16.mxu0 0
    %195 = vmatpush1.bf16.msra.mxu0 0
    %196 = vmatprep.subr.bf16.mxu0 0
    %197 = vmatpush1.bf16.msra.mxu0 0
    %198 = vmatprep.subr.bf16.mxu0 0
    %199 = vmatpush1.bf16.msra.mxu0 0
    %200 = vmatprep.subr.bf16.mxu0 0
    %201 = vmatpush1.bf16.msra.mxu0 0
    %202 = vmatprep.subr.bf16.mxu0 0
    %203 = vmatpush1.bf16.msra.mxu0 0
    %204 = vmatprep.subr.bf16.mxu0 0
    %205 = vmatpush1.bf16.msra.mxu0 0
    %206 = vmatprep.subr.bf16.mxu0 0
    %207 = vmatpush1.bf16.msra.mxu0 0
    %208 = vmatprep.subr.bf16.mxu0 0
    %209 = vmatpush1.bf16.msra.mxu0 0
    %210 = vmatprep.subr.bf16.mxu0 0
    %211 = vmatpush1.bf16.msra.mxu0 0
    %212 = vmatprep.subr.bf16.mxu0 0
    %213 = vmatpush1.bf16.msra.mxu0 0
    %214 = vmatprep.mubr.bf16.mxu0 0
    %215 = vmatmul.mubr.bf16.gmra.mrb[0].mxu0 %v78
    %v216 = vpop.f32.mrb[0].mxu0
    %v217 = vadd.f32 0.0, %v216
    %v218 = vpop.f32.mrb[0].mxu0
    %v219 = vpop.f32.mrb[0].mxu0
    %v220 = vadd.f32 0.0, %v219
    %v221 = vpop.f32.mrb[0].mxu0
    %222 = vdwg.mxu0
    %v223 = vld [vmem:[%s5] sm:$0xf]
    %v224 = vld [vmem:[%s5 + $0x4] sm:$0xf]
    %v225 = vld [vmem:[%s5 + $0x8] sm:$0xf]
    %v226 = vld [vmem:[%s5 + $0xc] sm:$0xf]
    %v227 = vpack.c.bf16 %v220, %v217
    %v228 = vld [vmem:[%s6] sm:$0x1]
    %v230 = vlaneseq
    %v231 = vshrl.u32 %v230, 7
    %v232 = vsub.s32 0, %v231
    %v233 = vrot.slane %v228, %v232
    %v239 = vunpack.c.l.b16 %v223
    %v240 = vunpack.c.l.b16 %v224
    %v241 = vunpack.c.l.b16 %v225
    %v242 = vunpack.c.l.b16 %v226
    %v243 = vpack.c.b16 %v240, %v239
    %v244 = vpack.c.b16 %v242, %v241
    %vm247 = vcmask 261120
    %v249 = vsel %vm247, %v227, 0
    %251 = vmatprep.subr.bf16.mxu0 0
    %252 = vmatpush1.bf16.msra.mxu0 %v243
    %253 = vmatprep.subr.bf16.mxu0 0
    %254 = vmatpush1.bf16.msra.mxu0 %v244
    %255 = vmatprep.subr.bf16.mxu0 0
    %256 = vmatpush1.bf16.msra.mxu0 0
    %257 = vmatprep.subr.bf16.mxu0 0
    %258 = vmatpush1.bf16.msra.mxu0 0
    %259 = vmatprep.subr.bf16.mxu0 0
    %260 = vmatpush1.bf16.msra.mxu0 0
    %261 = vmatprep.subr.bf16.mxu0 0
    %262 = vmatpush1.bf16.msra.mxu0 0
    %263 = vmatprep.subr.bf16.mxu0 0
    %264 = vmatpush1.bf16.msra.mxu0 0
    %265 = vmatprep.subr.bf16.mxu0 0
    %266 = vmatpush1.bf16.msra.mxu0 0
    %267 = vmatprep.subr.bf16.mxu0 0
    %268 = vmatpush1.bf16.msra.mxu0 0
    %269 = vmatprep.subr.bf16.mxu0 0
    %270 = vmatpush1.bf16.msra.mxu0 0
    %271 = vmatprep.subr.bf16.mxu0 0
    %272 = vmatpush1.bf16.msra.mxu0 0
    %273 = vmatprep.subr.bf16.mxu0 0
    %274 = vmatpush1.bf16.msra.mxu0 0
    %275 = vmatprep.subr.bf16.mxu0 0
    %276 = vmatpush1.bf16.msra.mxu0 0
    %277 = vmatprep.subr.bf16.mxu0 0
    %278 = vmatpush1.bf16.msra.mxu0 0
    %279 = vmatprep.subr.bf16.mxu0 0
    %280 = vmatpush1.bf16.msra.mxu0 0
    %281 = vmatprep.subr.bf16.mxu0 0
    %282 = vmatpush1.bf16.msra.mxu0 0
    %283 = vmatprep.mubr.bf16.mxu0 0
    %284 = vmatmul.mubr.bf16.gmra.mrb[0].mxu0 %v249
    %v285 = vpop.f32.mrb[0].mxu0
    %v286 = vadd.f32 %v233, %v285
    %v287 = vpop.f32.mrb[0].mxu0
    %v288 = vpop.f32.mrb[0].mxu0
    %v289 = vadd.f32 %v233, %v288
    %v290 = vpop.f32.mrb[0].mxu0
    %291 = vdwg.mxu0
    %v292 = vmax.f32 %v286, 0.0
    %v293 = vmax.f32 %v289, 0.0
    %296 = vrot.lane.b32.xlu0 %v292, 32
    %v297 = vpop.permute.xlu0 %296
    %298 = vrot.lane.b32.xlu0 %v293, 32
    %v299 = vpop.permute.xlu0 %298
    %v302 = vsel %vm247, %v179, %v297
    %v303 = vsel %vm247, %v180, %v299
    %v304 = vld [vmem:[%s2] sm:$0x1]
    %v305 = vpack.c.bf16 %v303, %v302
    %v307 = vsel %vm76, %v304, 0
    %309 = vmatprep.subr.bf16.mxu0 0
    %310 = vmatpush1.bf16.msra.mxu0 %v305
    %311 = vmatprep.subr.bf16.mxu0 0
    %312 = vmatpush1.bf16.msra.mxu0 0
    %313 = vmatprep.subr.bf16.mxu0 0
    %314 = vmatpush1.bf16.msra.mxu0 0
    %315 = vmatprep.subr.bf16.mxu0 0
    %316 = vmatpush1.bf16.msra.mxu0 0
    %317 = vmatprep.subr.bf16.mxu0 0
    %318 = vmatpush1.bf16.msra.mxu0 0
    %319 = vmatprep.subr.bf16.mxu0 0
    %320 = vmatpush1.bf16.msra.mxu0 0
    %321 = vmatprep.subr.bf16.mxu0 0
    %322 = vmatpush1.bf16.msra.mxu0 0
    %323 = vmatprep.subr.bf16.mxu0 0
    %324 = vmatpush1.bf16.msra.mxu0 0
    %325 = vmatprep.subr.bf16.mxu0 0
    %326 = vmatpush1.bf16.msra.mxu0 0
    %327 = vmatprep.subr.bf16.mxu0 0
    %328 = vmatpush1.bf16.msra.mxu0 0
    %329 = vmatprep.subr.bf16.mxu0 0
    %330 = vmatpush1.bf16.msra.mxu0 0
    %331 = vmatprep.subr.bf16.mxu0 0
    %332 = vmatpush1.bf16.msra.mxu0 0
    %333 = vmatprep.subr.bf16.mxu0 0
    %334 = vmatpush1.bf16.msra.mxu0 0
    %335 = vmatprep.subr.bf16.mxu0 0
    %336 = vmatpush1.bf16.msra.mxu0 0
    %337 = vmatprep.subr.bf16.mxu0 0
    %338 = vmatpush1.bf16.msra.mxu0 0
    %339 = vmatprep.subr.bf16.mxu0 0
    %340 = vmatpush1.bf16.msra.mxu0 0
    %341 = vmatprep.mubr.bf16.mxu0 0
    %342 = vmatmul.mubr.bf16.gmra.mrb[0].mxu0 %v307
    %v343 = vpop.f32.mrb[0].mxu0
    %v344 = vadd.f32 0.0, %v343
    %v345 = vpop.f32.mrb[0].mxu0
    %v346 = vpop.f32.mrb[0].mxu0
    %v347 = vpop.f32.mrb[0].mxu0
    %348 = vdwg.mxu0
    %v349 = vld [vmem:[%s7] sm:$0xf]
    %v350 = vld [vmem:[%s7 + $0x4] sm:$0xf]
    %v351 = vld [vmem:[%s7 + $0x8] sm:$0xf]
    %v352 = vld [vmem:[%s7 + $0xc] sm:$0xf]
    %v353 = vld [vmem:[%s7 + $0x10] sm:$0xf]
    %v354 = vld [vmem:[%s7 + $0x14] sm:$0xf]
    %v355 = vld [vmem:[%s7 + $0x18] sm:$0xf]
    %v356 = vld [vmem:[%s7 + $0x1c] sm:$0xf]
    %v357 = vpack.c.bf16 %v344, %v344
    %v358 = vld [vmem:[%s8] sm:$0x1]
    %v360 = vlaneseq
    %v361 = vshrl.u32 %v360, 7
    %v362 = vsub.s32 0, %v361
    %v363 = vrot.slane %v358, %v362
    %v373 = vunpack.c.l.b16 %v349
    %v374 = vunpack.c.l.b16 %v350
    %v375 = vunpack.c.l.b16 %v351
    %v376 = vunpack.c.l.b16 %v352
    %v377 = vunpack.c.l.b16 %v353
    %v378 = vunpack.c.l.b16 %v354
    %v379 = vunpack.c.l.b16 %v355
    %v380 = vunpack.c.l.b16 %v356
    %v381 = vpack.c.b16 %v374, %v373
    %v382 = vpack.c.b16 %v376, %v375
    %v383 = vpack.c.b16 %v378, %v377
    %v384 = vpack.c.b16 %v380, %v379
    %vm389 = vcmask 523264
    %v391 = vsel %vm389, %v357, 0
    %393 = vmatprep.subr.bf16.mxu0 0
    %394 = vmatpush1.bf16.msra.mxu0 %v381
    %395 = vmatprep.subr.bf16.mxu0 0
    %396 = vmatpush1.bf16.msra.mxu0 %v382
    %397 = vmatprep.subr.bf16.mxu0 0
    %398 = vmatpush1.bf16.msra.mxu0 %v383
    %399 = vmatprep.subr.bf16.mxu0 0
    %400 = vmatpush1.bf16.msra.mxu0 %v384
    %401 = vmatprep.subr.bf16.mxu0 0
    %402 = vmatpush1.bf16.msra.mxu0 0
    %403 = vmatprep.subr.bf16.mxu0 0
    %404 = vmatpush1.bf16.msra.mxu0 0
    %405 = vmatprep.subr.bf16.mxu0 0
    %406 = vmatpush1.bf16.msra.mxu0 0
    %407 = vmatprep.subr.bf16.mxu0 0
    %408 = vmatpush1.bf16.msra.mxu0 0
    %409 = vmatprep.subr.bf16.mxu0 0
    %410 = vmatpush1.bf16.msra.mxu0 0
    %411 = vmatprep.subr.bf16.mxu0 0
    %412 = vmatpush1.bf16.msra.mxu0 0
    %413 = vmatprep.subr.bf16.mxu0 0
    %414 = vmatpush1.bf16.msra.mxu0 0
    %415 = vmatprep.subr.bf16.mxu0 0
    %416 = vmatpush1.bf16.msra.mxu0 0
    %417 = vmatprep.subr.bf16.mxu0 0
    %418 = vmatpush1.bf16.msra.mxu0 0
    %419 = vmatprep.subr.bf16.mxu0 0
    %420 = vmatpush1.bf16.msra.mxu0 0
    %421 = vmatprep.subr.bf16.mxu0 0
    %422 = vmatpush1.bf16.msra.mxu0 0
    %423 = vmatprep.subr.bf16.mxu0 0
    %424 = vmatpush1.bf16.msra.mxu0 0
    %425 = vmatprep.mubr.bf16.mxu0 0
    %426 = vmatmul.mubr.bf16.gmra.mrb[0].mxu0 %v391
    %v427 = vpop.f32.mrb[0].mxu0
    %v428 = vadd.f32 %v363, %v427
    %v429 = vpop.f32.mrb[0].mxu0
    %v430 = vpop.f32.mrb[0].mxu0
    %v431 = vpop.f32.mrb[0].mxu0
    %432 = vdwg.mxu0
    %v433 = vmax.f32 %v428, 0.0
    %s434 = scalar_lea.vmem %s7, 32
    %v435 = vld [vmem:[%s434] sm:$0xf]
    %v436 = vld [vmem:[%s434 + $0x4] sm:$0xf]
    %v437 = vld [vmem:[%s434 + $0x8] sm:$0xf]
    %v438 = vld [vmem:[%s434 + $0xc] sm:$0xf]
    %v439 = vld [vmem:[%s434 + $0x10] sm:$0xf]
    %v440 = vld [vmem:[%s434 + $0x14] sm:$0xf]
    %v441 = vld [vmem:[%s434 + $0x18] sm:$0xf]
    %v442 = vld [vmem:[%s434 + $0x1c] sm:$0xf]
    %v443 = vpack.c.bf16 %v433, %v433
    %s444 = scalar_lea.vmem %s8, 1
    %v445 = vld [vmem:[%s444] sm:$0x1]
    %v447 = vlaneseq
    %v448 = vshrl.u32 %v447, 7
    %v449 = vsub.s32 0, %v448
    %v450 = vrot.slane %v445, %v449
    %v460 = vunpack.c.l.b16 %v435
    %v461 = vunpack.c.l.b16 %v436
    %v462 = vunpack.c.l.b16 %v437
    %v463 = vunpack.c.l.b16 %v438
    %v464 = vunpack.c.l.b16 %v439
    %v465 = vunpack.c.l.b16 %v440
    %v466 = vunpack.c.l.b16 %v441
    %v467 = vunpack.c.l.b16 %v442
    %v468 = vpack.c.b16 %v461, %v460
    %v469 = vpack.c.b16 %v463, %v462
    %v470 = vpack.c.b16 %v465, %v464
    %v471 = vpack.c.b16 %v467, %v466
    %v477 = vsel %vm389, %v443, 0
    %479 = vmatprep.subr.bf16.mxu0 0
    %480 = vmatpush1.bf16.msra.mxu0 %v468
    %481 = vmatprep.subr.bf16.mxu0 0
    %482 = vmatpush1.bf16.msra.mxu0 %v469
    %483 = vmatprep.subr.bf16.mxu0 0
    %484 = vmatpush1.bf16.msra.mxu0 %v470
    %485 = vmatprep.subr.bf16.mxu0 0
    %486 = vmatpush1.bf16.msra.mxu0 %v471
    %487 = vmatprep.subr.bf16.mxu0 0
    %488 = vmatpush1.bf16.msra.mxu0 0
    %489 = vmatprep.subr.bf16.mxu0 0
    %490 = vmatpush1.bf16.msra.mxu0 0
    %491 = vmatprep.subr.bf16.mxu0 0
    %492 = vmatpush1.bf16.msra.mxu0 0
    %493 = vmatprep.subr.bf16.mxu0 0
    %494 = vmatpush1.bf16.msra.mxu0 0
    %495 = vmatprep.subr.bf16.mxu0 0
    %496 = vmatpush1.bf16.msra.mxu0 0
    %497 = vmatprep.subr.bf16.mxu0 0
    %498 = vmatpush1.bf16.msra.mxu0 0
    %499 = vmatprep.subr.bf16.mxu0 0
    %500 = vmatpush1.bf16.msra.mxu0 0
    %501 = vmatprep.subr.bf16.mxu0 0
    %502 = vmatpush1.bf16.msra.mxu0 0
    %503 = vmatprep.subr.bf16.mxu0 0
    %504 = vmatpush1.bf16.msra.mxu0 0
    %505 = vmatprep.subr.bf16.mxu0 0
    %506 = vmatpush1.bf16.msra.mxu0 0
    %507 = vmatprep.subr.bf16.mxu0 0
    %508 = vmatpush1.bf16.msra.mxu0 0
    %509 = vmatprep.subr.bf16.mxu0 0
    %510 = vmatpush1.bf16.msra.mxu0 0
    %511 = vmatprep.mubr.bf16.mxu0 0
    %512 = vmatmul.mubr.bf16.gmra.mrb[0].mxu0 %v477
    %v513 = vpop.f32.mrb[0].mxu0
    %v514 = vadd.f32 %v450, %v513
    %v515 = vpop.f32.mrb[0].mxu0
    %v516 = vpop.f32.mrb[0].mxu0
    %v517 = vpop.f32.mrb[0].mxu0
    %518 = vdwg.mxu0
    %v519 = vmax.f32 %v514, 0.0
    %s520 = scalar_lea.vmem %s7, 64
    %v521 = vld [vmem:[%s520] sm:$0xf]
    %v522 = vld [vmem:[%s520 + $0x4] sm:$0xf]
    %v523 = vld [vmem:[%s520 + $0x8] sm:$0xf]
    %v524 = vld [vmem:[%s520 + $0xc] sm:$0xf]
    %v525 = vld [vmem:[%s520 + $0x10] sm:$0xf]
    %v526 = vld [vmem:[%s520 + $0x14] sm:$0xf]
    %v527 = vld [vmem:[%s520 + $0x18] sm:$0xf]
    %v528 = vld [vmem:[%s520 + $0x1c] sm:$0xf]
    %v529 = vpack.c.bf16 %v519, %v519
    %s530 = scalar_lea.vmem %s8, 2
    %v531 = vld [vmem:[%s530] sm:$0x1]
    %v533 = vlaneseq
    %v534 = vshrl.u32 %v533, 7
    %v535 = vsub.s32 0, %v534
    %v536 = vrot.slane %v531, %v535
    %v546 = vunpack.c.l.b16 %v521
    %v547 = vunpack.c.l.b16 %v522
    %v548 = vunpack.c.l.b16 %v523
    %v549 = vunpack.c.l.b16 %v524
    %v550 = vunpack.c.l.b16 %v525
    %v551 = vunpack.c.l.b16 %v526
    %v552 = vunpack.c.l.b16 %v527
    %v553 = vunpack.c.l.b16 %v528
    %v554 = vpack.c.b16 %v547, %v546
    %v555 = vpack.c.b16 %v549, %v548
    %v556 = vpack.c.b16 %v551, %v550
    %v557 = vpack.c.b16 %v553, %v552
    %v563 = vsel %vm389, %v529, 0
    %565 = vmatprep.subr.bf16.mxu0 0
    %566 = vmatpush1.bf16.msra.mxu0 %v554
    %567 = vmatprep.subr.bf16.mxu0 0
    %568 = vmatpush1.bf16.msra.mxu0 %v555
    %569 = vmatprep.subr.bf16.mxu0 0
    %570 = vmatpush1.bf16.msra.mxu0 %v556
    %571 = vmatprep.subr.bf16.mxu0 0
    %572 = vmatpush1.bf16.msra.mxu0 %v557
    %573 = vmatprep.subr.bf16.mxu0 0
    %574 = vmatpush1.bf16.msra.mxu0 0
    %575 = vmatprep.subr.bf16.mxu0 0
    %576 = vmatpush1.bf16.msra.mxu0 0
    %577 = vmatprep.subr.bf16.mxu0 0
    %578 = vmatpush1.bf16.msra.mxu0 0
    %579 = vmatprep.subr.bf16.mxu0 0
    %580 = vmatpush1.bf16.msra.mxu0 0
    %581 = vmatprep.subr.bf16.mxu0 0
    %582 = vmatpush1.bf16.msra.mxu0 0
    %583 = vmatprep.subr.bf16.mxu0 0
    %584 = vmatpush1.bf16.msra.mxu0 0
    %585 = vmatprep.subr.bf16.mxu0 0
    %586 = vmatpush1.bf16.msra.mxu0 0
    %587 = vmatprep.subr.bf16.mxu0 0
    %588 = vmatpush1.bf16.msra.mxu0 0
    %589 = vmatprep.subr.bf16.mxu0 0
    %590 = vmatpush1.bf16.msra.mxu0 0
    %591 = vmatprep.subr.bf16.mxu0 0
    %592 = vmatpush1.bf16.msra.mxu0 0
    %593 = vmatprep.subr.bf16.mxu0 0
    %594 = vmatpush1.bf16.msra.mxu0 0
    %595 = vmatprep.subr.bf16.mxu0 0
    %596 = vmatpush1.bf16.msra.mxu0 0
    %597 = vmatprep.mubr.bf16.mxu0 0
    %598 = vmatmul.mubr.bf16.gmra.mrb[0].mxu0 %v563
    %v599 = vpop.f32.mrb[0].mxu0
    %v600 = vadd.f32 %v536, %v599
    %v601 = vpop.f32.mrb[0].mxu0
    %v602 = vpop.f32.mrb[0].mxu0
    %v603 = vpop.f32.mrb[0].mxu0
    %604 = vdwg.mxu0
    %v605 = vmax.f32 %v600, 0.0
    %v606 = vld [vmem:[%s9] sm:$0xf]
    %v607 = vld [vmem:[%s9 + $0x4] sm:$0xf]
    %v608 = vld [vmem:[%s9 + $0x8] sm:$0xf]
    %v609 = vld [vmem:[%s9 + $0xc] sm:$0xf]
    %v610 = vld [vmem:[%s9 + $0x10] sm:$0xf]
    %v611 = vld [vmem:[%s9 + $0x14] sm:$0xf]
    %v612 = vld [vmem:[%s9 + $0x18] sm:$0xf]
    %v613 = vld [vmem:[%s9 + $0x1c] sm:$0xf]
    %v622 = vunpack.c.l.b16 %v606
    %v623 = vunpack.c.l.b16 %v607
    %v624 = vunpack.c.l.b16 %v608
    %v625 = vunpack.c.l.b16 %v609
    %v626 = vunpack.c.l.b16 %v610
    %v627 = vunpack.c.l.b16 %v611
    %v628 = vunpack.c.l.b16 %v612
    %v629 = vunpack.c.l.b16 %v613
    %v630 = vpack.c.b16 %v623, %v622
    %v631 = vpack.c.b16 %v625, %v624
    %v632 = vpack.c.b16 %v627, %v626
    %v633 = vpack.c.b16 %v629, %v628
    %638 = vmatprep.subr.bf16.mxu0 0
    %639 = vmatpush1.bf16.msra.mxu0 %v630
    %640 = vmatprep.subr.bf16.mxu0 0
    %641 = vmatpush1.bf16.msra.mxu0 %v631
    %642 = vmatprep.subr.bf16.mxu0 0
    %643 = vmatpush1.bf16.msra.mxu0 %v632
    %644 = vmatprep.subr.bf16.mxu0 0
    %645 = vmatpush1.bf16.msra.mxu0 %v633
    %646 = vmatprep.subr.bf16.mxu0 0
    %647 = vmatpush1.bf16.msra.mxu0 0
    %648 = vmatprep.subr.bf16.mxu0 0
    %649 = vmatpush1.bf16.msra.mxu0 0
    %650 = vmatprep.subr.bf16.mxu0 0
    %651 = vmatpush1.bf16.msra.mxu0 0
    %652 = vmatprep.subr.bf16.mxu0 0
    %653 = vmatpush1.bf16.msra.mxu0 0
    %654 = vmatprep.subr.bf16.mxu0 0
    %655 = vmatpush1.bf16.msra.mxu0 0
    %656 = vmatprep.subr.bf16.mxu0 0
    %657 = vmatpush1.bf16.msra.mxu0 0
    %658 = vmatprep.subr.bf16.mxu0 0
    %659 = vmatpush1.bf16.msra.mxu0 0
    %660 = vmatprep.subr.bf16.mxu0 0
    %661 = vmatpush1.bf16.msra.mxu0 0
    %662 = vmatprep.subr.bf16.mxu0 0
    %663 = vmatpush1.bf16.msra.mxu0 0
    %664 = vmatprep.subr.bf16.mxu0 0
    %665 = vmatpush1.bf16.msra.mxu0 0
    %666 = vmatprep.subr.bf16.mxu0 0
    %667 = vmatpush1.bf16.msra.mxu0 0
    %668 = vmatprep.subr.bf16.mxu0 0
    %669 = vmatpush1.bf16.msra.mxu0 0
    %670 = vmatprep.mubr.bf16.mxu0 0
    %671 = vmatmul.mubr.bf16.gmra.mrb[0].mxu0 %v391
    %v672 = vpop.f32.mrb[0].mxu0
    %v673 = vadd.f32 0.0, %v672
    %v674 = vpop.f32.mrb[0].mxu0
    %v675 = vpop.f32.mrb[0].mxu0
    %v676 = vpop.f32.mrb[0].mxu0
    %677 = vdwg.mxu0
    %v678 = vadd.f32 %v605, %v673
    %v679 = vld [vmem:[%s10] sm:$0x1]
    %v681 = vlaneseq
    %v682 = vshrl.u32 %v681, 7
    %v683 = vsub.s32 0, %v682
    %v684 = vrot.slane %v679, %v683
    %v686 = vadd.f32 %v678, %v684
    %v687 = vld [vmem:[%s11] sm:$0xf]
    %v688 = vld [vmem:[%s11 + $0x4] sm:$0xf]
    %v689 = vld [vmem:[%s11 + $0x8] sm:$0xf]
    %v690 = vld [vmem:[%s11 + $0xc] sm:$0xf]
    %v691 = vld [vmem:[%s11 + $0x10] sm:$0xf]
    %v692 = vld [vmem:[%s11 + $0x14] sm:$0xf]
    %v693 = vld [vmem:[%s11 + $0x18] sm:$0xf]
    %v694 = vld [vmem:[%s11 + $0x1c] sm:$0xf]
    %v695 = vld [vmem:[%s12] sm:$0x1]
    %v697 = vlaneseq
    %v698 = vshrl.u32 %v697, 7
    %v699 = vsub.s32 0, %v698
    %v700 = vrot.slane %v695, %v699
    %v710 = vunpack.c.l.b16 %v687
    %v711 = vunpack.c.l.b16 %v688
    %v712 = vunpack.c.l.b16 %v689
    %v713 = vunpack.c.l.b16 %v690
    %v714 = vunpack.c.l.b16 %v691
    %v715 = vunpack.c.l.b16 %v692
    %v716 = vunpack.c.l.b16 %v693
    %v717 = vunpack.c.l.b16 %v694
    %v718 = vpack.c.b16 %v711, %v710
    %v719 = vpack.c.b16 %v713, %v712
    %v720 = vpack.c.b16 %v715, %v714
    %v721 = vpack.c.b16 %v717, %v716
    %v727 = vsel %vm389, %v305, 0
    %729 = vmatprep.subr.bf16.mxu0 0
    %730 = vmatpush1.bf16.msra.mxu0 %v718
    %731 = vmatprep.subr.bf16.mxu0 0
    %732 = vmatpush1.bf16.msra.mxu0 %v719
    %733 = vmatprep.subr.bf16.mxu0 0
    %734 = vmatpush1.bf16.msra.mxu0 %v720
    %735 = vmatprep.subr.bf16.mxu0 0
    %736 = vmatpush1.bf16.msra.mxu0 %v721
    %737 = vmatprep.subr.bf16.mxu0 0
    %738 = vmatpush1.bf16.msra.mxu0 0
    %739 = vmatprep.subr.bf16.mxu0 0
    %740 = vmatpush1.bf16.msra.mxu0 0
    %741 = vmatprep.subr.bf16.mxu0 0
    %742 = vmatpush1.bf16.msra.mxu0 0
    %743 = vmatprep.subr.bf16.mxu0 0
    %744 = vmatpush1.bf16.msra.mxu0 0
    %745 = vmatprep.subr.bf16.mxu0 0
    %746 = vmatpush1.bf16.msra.mxu0 0
    %747 = vmatprep.subr.bf16.mxu0 0
    %748 = vmatpush1.bf16.msra.mxu0 0
    %749 = vmatprep.subr.bf16.mxu0 0
    %750 = vmatpush1.bf16.msra.mxu0 0
    %751 = vmatprep.subr.bf16.mxu0 0
    %752 = vmatpush1.bf16.msra.mxu0 0
    %753 = vmatprep.subr.bf16.mxu0 0
    %754 = vmatpush1.bf16.msra.mxu0 0
    %755 = vmatprep.subr.bf16.mxu0 0
    %756 = vmatpush1.bf16.msra.mxu0 0
    %757 = vmatprep.subr.bf16.mxu0 0
    %758 = vmatpush1.bf16.msra.mxu0 0
    %759 = vmatprep.subr.bf16.mxu0 0
    %760 = vmatpush1.bf16.msra.mxu0 0
    %761 = vmatprep.mubr.bf16.mxu0 0
    %762 = vmatmul.mubr.bf16.gmra.mrb[0].mxu0 %v727
    %v763 = vpop.f32.mrb[0].mxu0
    %v764 = vadd.f32 %v700, %v763
    %v765 = vpop.f32.mrb[0].mxu0
    %v766 = vpop.f32.mrb[0].mxu0
    %v767 = vadd.f32 %v700, %v766
    %v768 = vpop.f32.mrb[0].mxu0
    %769 = vdwg.mxu0
    %v770 = vmax.f32 %v764, 0.0
    %v771 = vmax.f32 %v767, 0.0
    %s772 = scalar_lea.vmem %s11, 32
    %v773 = vld [vmem:[%s772] sm:$0xf]
    %v774 = vld [vmem:[%s772 + $0x4] sm:$0xf]
    %v775 = vld [vmem:[%s772 + $0x8] sm:$0xf]
    %v776 = vld [vmem:[%s772 + $0xc] sm:$0xf]
    %v777 = vld [vmem:[%s772 + $0x10] sm:$0xf]
    %v778 = vld [vmem:[%s772 + $0x14] sm:$0xf]
    %v779 = vld [vmem:[%s772 + $0x18] sm:$0xf]
    %v780 = vld [vmem:[%s772 + $0x1c] sm:$0xf]
    %v781 = vpack.c.bf16 %v771, %v770
    %s782 = scalar_lea.vmem %s12, 1
    %v783 = vld [vmem:[%s782] sm:$0x1]
    %v785 = vlaneseq
    %v786 = vshrl.u32 %v785, 7
    %v787 = vsub.s32 0, %v786
    %v788 = vrot.slane %v783, %v787
    %v798 = vunpack.c.l.b16 %v773
    %v799 = vunpack.c.l.b16 %v774
    %v800 = vunpack.c.l.b16 %v775
    %v801 = vunpack.c.l.b16 %v776
    %v802 = vunpack.c.l.b16 %v777
    %v803 = vunpack.c.l.b16 %v778
    %v804 = vunpack.c.l.b16 %v779
    %v805 = vunpack.c.l.b16 %v780
    %v806 = vpack.c.b16 %v799, %v798
    %v807 = vpack.c.b16 %v801, %v800
    %v808 = vpack.c.b16 %v803, %v802
    %v809 = vpack.c.b16 %v805, %v804
    %v815 = vsel %vm389, %v781, 0
    %817 = vmatprep.subr.bf16.mxu0 0
    %818 = vmatpush1.bf16.msra.mxu0 %v806
    %819 = vmatprep.subr.bf16.mxu0 0
    %820 = vmatpush1.bf16.msra.mxu0 %v807
    %821 = vmatprep.subr.bf16.mxu0 0
    %822 = vmatpush1.bf16.msra.mxu0 %v808
    %823 = vmatprep.subr.bf16.mxu0 0
    %824 = vmatpush1.bf16.msra.mxu0 %v809
    %825 = vmatprep.subr.bf16.mxu0 0
    %826 = vmatpush1.bf16.msra.mxu0 0
    %827 = vmatprep.subr.bf16.mxu0 0
    %828 = vmatpush1.bf16.msra.mxu0 0
    %829 = vmatprep.subr.bf16.mxu0 0
    %830 = vmatpush1.bf16.msra.mxu0 0
    %831 = vmatprep.subr.bf16.mxu0 0
    %832 = vmatpush1.bf16.msra.mxu0 0
    %833 = vmatprep.subr.bf16.mxu0 0
    %834 = vmatpush1.bf16.msra.mxu0 0
    %835 = vmatprep.subr.bf16.mxu0 0
    %836 = vmatpush1.bf16.msra.mxu0 0
    %837 = vmatprep.subr.bf16.mxu0 0
    %838 = vmatpush1.bf16.msra.mxu0 0
    %839 = vmatprep.subr.bf16.mxu0 0
    %840 = vmatpush1.bf16.msra.mxu0 0
    %841 = vmatprep.subr.bf16.mxu0 0
    %842 = vmatpush1.bf16.msra.mxu0 0
    %843 = vmatprep.subr.bf16.mxu0 0
    %844 = vmatpush1.bf16.msra.mxu0 0
    %845 = vmatprep.subr.bf16.mxu0 0
    %846 = vmatpush1.bf16.msra.mxu0 0
    %847 = vmatprep.subr.bf16.mxu0 0
    %848 = vmatpush1.bf16.msra.mxu0 0
    %849 = vmatprep.mubr.bf16.mxu0 0
    %850 = vmatmul.mubr.bf16.gmra.mrb[0].mxu0 %v815
    %v851 = vpop.f32.mrb[0].mxu0
    %v852 = vadd.f32 %v788, %v851
    %v853 = vpop.f32.mrb[0].mxu0
    %v854 = vpop.f32.mrb[0].mxu0
    %v855 = vadd.f32 %v788, %v854
    %v856 = vpop.f32.mrb[0].mxu0
    %857 = vdwg.mxu0
    %v858 = vmax.f32 %v852, 0.0
    %v859 = vmax.f32 %v855, 0.0
    %s860 = scalar_lea.vmem %s11, 64
    %v861 = vld [vmem:[%s860] sm:$0xf]
    %v862 = vld [vmem:[%s860 + $0x4] sm:$0xf]
    %v863 = vld [vmem:[%s860 + $0x8] sm:$0xf]
    %v864 = vld [vmem:[%s860 + $0xc] sm:$0xf]
    %v865 = vld [vmem:[%s860 + $0x10] sm:$0xf]
    %v866 = vld [vmem:[%s860 + $0x14] sm:$0xf]
    %v867 = vld [vmem:[%s860 + $0x18] sm:$0xf]
    %v868 = vld [vmem:[%s860 + $0x1c] sm:$0xf]
    %v869 = vpack.c.bf16 %v859, %v858
    %s870 = scalar_lea.vmem %s12, 2
    %v871 = vld [vmem:[%s870] sm:$0x1]
    %v873 = vlaneseq
    %v874 = vshrl.u32 %v873, 7
    %v875 = vsub.s32 0, %v874
    %v876 = vrot.slane %v871, %v875
    %v886 = vunpack.c.l.b16 %v861
    %v887 = vunpack.c.l.b16 %v862
    %v888 = vunpack.c.l.b16 %v863
    %v889 = vunpack.c.l.b16 %v864
    %v890 = vunpack.c.l.b16 %v865
    %v891 = vunpack.c.l.b16 %v866
    %v892 = vunpack.c.l.b16 %v867
    %v893 = vunpack.c.l.b16 %v868
    %v894 = vpack.c.b16 %v887, %v886
    %v895 = vpack.c.b16 %v889, %v888
    %v896 = vpack.c.b16 %v891, %v890
    %v897 = vpack.c.b16 %v893, %v892
    %v903 = vsel %vm389, %v869, 0
    %905 = vmatprep.subr.bf16.mxu0 0
    %906 = vmatpush1.bf16.msra.mxu0 %v894
    %907 = vmatprep.subr.bf16.mxu0 0
    %908 = vmatpush1.bf16.msra.mxu0 %v895
    %909 = vmatprep.subr.bf16.mxu0 0
    %910 = vmatpush1.bf16.msra.mxu0 %v896
    %911 = vmatprep.subr.bf16.mxu0 0
    %912 = vmatpush1.bf16.msra.mxu0 %v897
    %913 = vmatprep.subr.bf16.mxu0 0
    %914 = vmatpush1.bf16.msra.mxu0 0
    %915 = vmatprep.subr.bf16.mxu0 0
    %916 = vmatpush1.bf16.msra.mxu0 0
    %917 = vmatprep.subr.bf16.mxu0 0
    %918 = vmatpush1.bf16.msra.mxu0 0
    %919 = vmatprep.subr.bf16.mxu0 0
    %920 = vmatpush1.bf16.msra.mxu0 0
    %921 = vmatprep.subr.bf16.mxu0 0
    %922 = vmatpush1.bf16.msra.mxu0 0
    %923 = vmatprep.subr.bf16.mxu0 0
    %924 = vmatpush1.bf16.msra.mxu0 0
    %925 = vmatprep.subr.bf16.mxu0 0
    %926 = vmatpush1.bf16.msra.mxu0 0
    %927 = vmatprep.subr.bf16.mxu0 0
    %928 = vmatpush1.bf16.msra.mxu0 0
    %929 = vmatprep.subr.bf16.mxu0 0
    %930 = vmatpush1.bf16.msra.mxu0 0
    %931 = vmatprep.subr.bf16.mxu0 0
    %932 = vmatpush1.bf16.msra.mxu0 0
    %933 = vmatprep.subr.bf16.mxu0 0
    %934 = vmatpush1.bf16.msra.mxu0 0
    %935 = vmatprep.subr.bf16.mxu0 0
    %936 = vmatpush1.bf16.msra.mxu0 0
    %937 = vmatprep.mubr.bf16.mxu0 0
    %938 = vmatmul.mubr.bf16.gmra.mrb[0].mxu0 %v903
    %v939 = vpop.f32.mrb[0].mxu0
    %v940 = vadd.f32 %v876, %v939
    %v941 = vpop.f32.mrb[0].mxu0
    %v942 = vpop.f32.mrb[0].mxu0
    %v943 = vadd.f32 %v876, %v942
    %v944 = vpop.f32.mrb[0].mxu0
    %945 = vdwg.mxu0
    %v946 = vmax.f32 %v940, 0.0
    %v947 = vmax.f32 %v943, 0.0
    %v948 = vld [vmem:[%s13] sm:$0xf]
    %v949 = vld [vmem:[%s13 + $0x4] sm:$0xf]
    %v950 = vld [vmem:[%s13 + $0x8] sm:$0xf]
    %v951 = vld [vmem:[%s13 + $0xc] sm:$0xf]
    %v952 = vld [vmem:[%s13 + $0x10] sm:$0xf]
    %v953 = vld [vmem:[%s13 + $0x14] sm:$0xf]
    %v954 = vld [vmem:[%s13 + $0x18] sm:$0xf]
    %v955 = vld [vmem:[%s13 + $0x1c] sm:$0xf]
    %v964 = vunpack.c.l.b16 %v948
    %v965 = vunpack.c.l.b16 %v949
    %v966 = vunpack.c.l.b16 %v950
    %v967 = vunpack.c.l.b16 %v951
    %v968 = vunpack.c.l.b16 %v952
    %v969 = vunpack.c.l.b16 %v953
    %v970 = vunpack.c.l.b16 %v954
    %v971 = vunpack.c.l.b16 %v955
    %v972 = vpack.c.b16 %v965, %v964
    %v973 = vpack.c.b16 %v967, %v966
    %v974 = vpack.c.b16 %v969, %v968
    %v975 = vpack.c.b16 %v971, %v970
    %980 = vmatprep.subr.bf16.mxu0 0
    %981 = vmatpush1.bf16.msra.mxu0 %v972
    %982 = vmatprep.subr.bf16.mxu0 0
    %983 = vmatpush1.bf16.msra.mxu0 %v973
    %984 = vmatprep.subr.bf16.mxu0 0
    %985 = vmatpush1.bf16.msra.mxu0 %v974
    %986 = vmatprep.subr.bf16.mxu0 0
    %987 = vmatpush1.bf16.msra.mxu0 %v975
    %988 = vmatprep.subr.bf16.mxu0 0
    %989 = vmatpush1.bf16.msra.mxu0 0
    %990 = vmatprep.subr.bf16.mxu0 0
    %991 = vmatpush1.bf16.msra.mxu0 0
    %992 = vmatprep.subr.bf16.mxu0 0
    %993 = vmatpush1.bf16.msra.mxu0 0
    %994 = vmatprep.subr.bf16.mxu0 0
    %995 = vmatpush1.bf16.msra.mxu0 0
    %996 = vmatprep.subr.bf16.mxu0 0
    %997 = vmatpush1.bf16.msra.mxu0 0
    %998 = vmatprep.subr.bf16.mxu0 0
    %999 = vmatpush1.bf16.msra.mxu0 0
    %1000 = vmatprep.subr.bf16.mxu0 0
    %1001 = vmatpush1.bf16.msra.mxu0 0
    %1002 = vmatprep.subr.bf16.mxu0 0
    %1003 = vmatpush1.bf16.msra.mxu0 0
    %1004 = vmatprep.subr.bf16.mxu0 0
    %1005 = vmatpush1.bf16.msra.mxu0 0
    %1006 = vmatprep.subr.bf16.mxu0 0
    %1007 = vmatpush1.bf16.msra.mxu0 0
    %1008 = vmatprep.subr.bf16.mxu0 0
    %1009 = vmatpush1.bf16.msra.mxu0 0
    %1010 = vmatprep.subr.bf16.mxu0 0
    %1011 = vmatpush1.bf16.msra.mxu0 0
    %1012 = vmatprep.mubr.bf16.mxu0 0
    %1013 = vmatmul.mubr.bf16.gmra.mrb[0].mxu0 %v727
    %v1014 = vpop.f32.mrb[0].mxu0
    %v1015 = vadd.f32 0.0, %v1014
    %v1016 = vpop.f32.mrb[0].mxu0
    %v1017 = vpop.f32.mrb[0].mxu0
    %v1018 = vadd.f32 0.0, %v1017
    %v1019 = vpop.f32.mrb[0].mxu0
    %1020 = vdwg.mxu0
    %v1021 = vadd.f32 %v946, %v1015
    %v1022 = vadd.f32 %v947, %v1018
    %v1023 = vld [vmem:[%s14] sm:$0x1]
    %v1025 = vlaneseq
    %v1026 = vshrl.u32 %v1025, 7
    %v1027 = vsub.s32 0, %v1026
    %v1028 = vrot.slane %v1023, %v1027
    %v1030 = vadd.f32 %v1021, %v1028
    %v1031 = vadd.f32 %v1022, %v1028
    %v1032 = vld [vmem:[%s15] sm:$0xf]
    %v1033 = vld [vmem:[%s15 + $0x4] sm:$0xf]
    %v1034 = vld [vmem:[%s15 + $0x8] sm:$0xf]
    %v1035 = vld [vmem:[%s15 + $0xc] sm:$0xf]
    %v1036 = vld [vmem:[%s15 + $0x10] sm:$0xf]
    %v1037 = vld [vmem:[%s15 + $0x14] sm:$0xf]
    %v1038 = vld [vmem:[%s15 + $0x18] sm:$0xf]
    %v1039 = vld [vmem:[%s15 + $0x1c] sm:$0xf]
    %v1040 = vld [vmem:[%s16] sm:$0x1]
    %v1042 = vlaneseq
    %v1043 = vshrl.u32 %v1042, 7
    %v1044 = vsub.s32 0, %v1043
    %v1045 = vrot.slane %v1040, %v1044
    %v1055 = vunpack.c.l.b16 %v1032
    %v1056 = vunpack.c.l.b16 %v1033
    %v1057 = vunpack.c.l.b16 %v1034
    %v1058 = vunpack.c.l.b16 %v1035
    %v1059 = vunpack.c.l.b16 %v1036
    %v1060 = vunpack.c.l.b16 %v1037
    %v1061 = vunpack.c.l.b16 %v1038
    %v1062 = vunpack.c.l.b16 %v1039
    %v1063 = vpack.c.b16 %v1056, %v1055
    %v1064 = vpack.c.b16 %v1058, %v1057
    %v1065 = vpack.c.b16 %v1060, %v1059
    %v1066 = vpack.c.b16 %v1062, %v1061
    %1071 = vmatprep.subr.bf16.mxu0 0
    %1072 = vmatpush1.bf16.msra.mxu0 %v1063
    %1073 = vmatprep.subr.bf16.mxu0 0
    %1074 = vmatpush1.bf16.msra.mxu0 %v1064
    %1075 = vmatprep.subr.bf16.mxu0 0
    %1076 = vmatpush1.bf16.msra.mxu0 %v1065
    %1077 = vmatprep.subr.bf16.mxu0 0
    %1078 = vmatpush1.bf16.msra.mxu0 %v1066
    %1079 = vmatprep.subr.bf16.mxu0 0
    %1080 = vmatpush1.bf16.msra.mxu0 0
    %1081 = vmatprep.subr.bf16.mxu0 0
    %1082 = vmatpush1.bf16.msra.mxu0 0
    %1083 = vmatprep.subr.bf16.mxu0 0
    %1084 = vmatpush1.bf16.msra.mxu0 0
    %1085 = vmatprep.subr.bf16.mxu0 0
    %1086 = vmatpush1.bf16.msra.mxu0 0
    %1087 = vmatprep.subr.bf16.mxu0 0
    %1088 = vmatpush1.bf16.msra.mxu0 0
    %1089 = vmatprep.subr.bf16.mxu0 0
    %1090 = vmatpush1.bf16.msra.mxu0 0
    %1091 = vmatprep.subr.bf16.mxu0 0
    %1092 = vmatpush1.bf16.msra.mxu0 0
    %1093 = vmatprep.subr.bf16.mxu0 0
    %1094 = vmatpush1.bf16.msra.mxu0 0
    %1095 = vmatprep.subr.bf16.mxu0 0
    %1096 = vmatpush1.bf16.msra.mxu0 0
    %1097 = vmatprep.subr.bf16.mxu0 0
    %1098 = vmatpush1.bf16.msra.mxu0 0
    %1099 = vmatprep.subr.bf16.mxu0 0
    %1100 = vmatpush1.bf16.msra.mxu0 0
    %1101 = vmatprep.subr.bf16.mxu0 0
    %1102 = vmatpush1.bf16.msra.mxu0 0
    %1103 = vmatprep.mubr.bf16.mxu0 0
    %1104 = vmatmul.mubr.bf16.gmra.mrb[0].mxu0 %v391
    %v1105 = vpop.f32.mrb[0].mxu0
    %v1106 = vadd.f32 %v1045, %v1105
    %v1107 = vpop.f32.mrb[0].mxu0
    %v1108 = vpop.f32.mrb[0].mxu0
    %v1109 = vpop.f32.mrb[0].mxu0
    %1110 = vdwg.mxu0
    %v1111 = vld [vmem:[%s17] sm:$0xff]
    %v1112 = vld [vmem:[%s17 + $0x8] sm:$0xff]
    %v1114 = vsel %vm76, %v1106, 0
    %v1117 = vsel %vm76, %v1111, 0
    %v1120 = vsel %vm76, %v1112, 0
    %1122 = vmatprep.subr.mxu0 0.0
    %1123 = vmatpush1.xpose.msra.mxu0 %v1117
    %1124 = vmatprep.subr.mxu0 0.0
    %1125 = vmatpush1.xpose.msra.mxu0 %v1120
    %1126 = vmatprep.subr.mxu0 0.0
    %1127 = vmatpush1.xpose.msra.mxu0 0.0
    %1128 = vmatprep.subr.mxu0 0.0
    %1129 = vmatpush1.xpose.msra.mxu0 0.0
    %1130 = vmatprep.subr.mxu0 0.0
    %1131 = vmatpush1.xpose.msra.mxu0 0.0
    %1132 = vmatprep.subr.mxu0 0.0
    %1133 = vmatpush1.xpose.msra.mxu0 0.0
    %1134 = vmatprep.subr.mxu0 0.0
    %1135 = vmatpush1.xpose.msra.mxu0 0.0
    %1136 = vmatprep.subr.mxu0 0.0
    %1137 = vmatpush1.xpose.msra.mxu0 0.0
    %1138 = vmatprep.subr.mxu0 0.0
    %1139 = vmatpush1.xpose.msra.mxu0 0.0
    %1140 = vmatprep.subr.mxu0 0.0
    %1141 = vmatpush1.xpose.msra.mxu0 0.0
    %1142 = vmatprep.subr.mxu0 0.0
    %1143 = vmatpush1.xpose.msra.mxu0 0.0
    %1144 = vmatprep.subr.mxu0 0.0
    %1145 = vmatpush1.xpose.msra.mxu0 0.0
    %1146 = vmatprep.subr.mxu0 0.0
    %1147 = vmatpush1.xpose.msra.mxu0 0.0
    %1148 = vmatprep.subr.mxu0 0.0
    %1149 = vmatpush1.xpose.msra.mxu0 0.0
    %1150 = vmatprep.subr.mxu0 0.0
    %1151 = vmatpush1.xpose.msra.mxu0 0.0
    %1152 = vmatprep.subr.mxu0 0.0
    %1153 = vmatpush1.xpose.msra.mxu0 0.0
    %1154 = vmatprep.subr.mxu0 0.0
    %1155 = vmatpush1.xpose.msra.mxu0 0.0
    %1156 = vmatprep.subr.mxu0 0.0
    %1157 = vmatpush1.xpose.msra.mxu0 0.0
    %1158 = vmatprep.subr.mxu0 0.0
    %1159 = vmatpush1.xpose.msra.mxu0 0.0
    %1160 = vmatprep.subr.mxu0 0.0
    %1161 = vmatpush1.xpose.msra.mxu0 0.0
    %1162 = vmatprep.subr.mxu0 0.0
    %1163 = vmatpush1.xpose.msra.mxu0 0.0
    %1164 = vmatprep.subr.mxu0 0.0
    %1165 = vmatpush1.xpose.msra.mxu0 0.0
    %1166 = vmatprep.subr.mxu0 0.0
    %1167 = vmatpush1.xpose.msra.mxu0 0.0
    %1168 = vmatprep.subr.mxu0 0.0
    %1169 = vmatpush1.xpose.msra.mxu0 0.0
    %1170 = vmatprep.subr.mxu0 0.0
    %1171 = vmatpush1.xpose.msra.mxu0 0.0
    %1172 = vmatprep.subr.mxu0 0.0
    %1173 = vmatpush1.xpose.msra.mxu0 0.0
    %1174 = vmatprep.subr.mxu0 0.0
    %1175 = vmatpush1.xpose.msra.mxu0 0.0
    %1176 = vmatprep.subr.mxu0 0.0
    %1177 = vmatpush1.xpose.msra.mxu0 0.0
    %1178 = vmatprep.subr.mxu0 0.0
    %1179 = vmatpush1.xpose.msra.mxu0 0.0
    %1180 = vmatprep.subr.mxu0 0.0
    %1181 = vmatpush1.xpose.msra.mxu0 0.0
    %1182 = vmatprep.subr.mxu0 0.0
    %1183 = vmatpush1.xpose.msra.mxu0 0.0
    %1184 = vmatprep.subr.mxu0 0.0
    %1185 = vmatpush1.xpose.msra.mxu0 0.0
    %1186 = vmatprep.mubr.f32.mxu0 0.0
    %1187 = vmatmul.mubr.f32.gmra.mrb[0].mxu0 %v1114
    %v1188 = vpop.f32.mrb[0].mxu0
    %v1189 = vadd.f32 0.0, %v1188
    %v1190 = vpop.f32.mrb[0].mxu0
    %1191 = vdwg.mxu0
    %v1192 = vmul.f32 %v1106, %v1106
    %vm1193 = vcmask 123904
    %v1194 = vsel %vm1193, %v1192, 0.0
    %1195 = vadd.xlane.f32.xlu0 %v1194
    %v1196 = vpop.xlane.xlu0 %1195
    %v1197 = vld [vmem:[%s18] sm:$0x1]
    %v1199 = vlaneseq
    %v1200 = vshrl.u32 %v1199, 7
    %v1201 = vsub.s32 0, %v1200
    %v1202 = vrot.slane %v1197, %v1201
    %v1204 = vadd.f32 %v1196, %v1202
    %v1205 = vmul.f32 %v1189, 2.0
    %v1206 = vsub.f32 %v1204, %v1205
    %v1207 = vmax.f32 %v1206, 0.0
    %v1208 = vadd.f32 %v1207, 1.0
    %v1209 = vrcp.pop %v1208
    %v1210 = vsel %vm1193, %v1209, 0.0
    %1211 = vadd.xlane.f32.xlu0 %v1210
    %v1212 = vpop.xlane.xlu0 %1211
    %v1213 = vrcp.pop %v1212
    %v1214 = vmul.f32 %v1209, %v1213
    %1216 = vrot.lane.b32.xlu0 %v1214, 16
    %v1217 = vpop.permute.xlu0 %1216
    %1220 = vrot.lane.b32.xlu0 %v686, 32
    %v1221 = vpop.permute.xlu0 %1220
    %v1223 = vsel %vm76, %v1106, %v1217
    %v1224 = vsel %vm247, %v1223, %v1221
    %vm1225 = vcmask 785408
    %v1226 = vsel %vm1225, %v1224, 0.0
    %1227 = vst [vmem:[%s19] sm:$0x3] %v1226
    %v1228 = vsel %vm389, %v1030, 0.0
    %v1229 = vsel %vm389, %v1031, 0.0
    %1230 = vst [vmem:[#allocation2] sm:$0xff] %v1228
    %1231 = vst [vmem:[#allocation2 + $0x8] sm:$0xff] %v1229
    // Predicated region
    $region78: #{gpc_forward.1} parent=1 // pred_check
      _
    $region79: #{gpc_forward.1} parent=1 // pred_check_branch
      %1233 = sbr.rel (0) target = $region81
    $region80: #{gpc_forward.1} parent=1 // pred_region
      _
    $region81: #{gpc_forward.1} parent=1 // pred_fallthru
      _
    // Predicated region
    $region82: #{gpc_forward.1} parent=1 // pred_check
      _
    $region83: #{gpc_forward.1} parent=1 // pred_check_branch
      %1235 = sbr.rel (0) target = $region85
    $region84: #{gpc_forward.1} parent=1 // pred_region
      %s1237 = ssub.s32 256, 256
      %1238 = vsyncadd [#allocation3], %s1237
      %s1239 = sshll.u32 [#allocation2], 4
      %s1240 = int_to_ptr.vmem [resolvable:$true] %s1239
      %1245 = dma.vmem_to_hbm [thread:$0]  %s1240, 256, %s20, [#allocation3], 128, 128, 8
    $region85: #{gpc_forward.1} parent=1 // pred_fallthru
      _
    // Predicated region
    $region86: #{gpc_forward.1} parent=1 // pred_check
      _
    $region87: #{gpc_forward.1} parent=1 // pred_check_branch
      %1247 = sbr.rel (0) target = $region89
    $region88: #{gpc_forward.1} parent=1 // pred_region
      _
    $region89: #{gpc_forward.1} parent=1 // pred_fallthru
      _
    // Predicated region
    $region90: #{gpc_forward.1} parent=1 // pred_check
      _
    $region91: #{gpc_forward.1} parent=1 // pred_check_branch
      %1249 = sbr.rel (0) target = $region93
    $region92: #{gpc_forward.1} parent=1 // pred_region
      %1250 = dma.done [#allocation3], 256
    $region93: #{gpc_forward.1} parent=1 // pred_fallthru
      _
    %1251 = vsyncpa [#allocation3], 1

</llo_original>
